<compile_context>
chip_gen: v7x
topology: tpu7x:2x2x1
jax: 0.10.0
libtpu: 0.0.40
codegen_flags: <defaults>
</compile_context>

<pallas_src>
import functools
import numpy as np
import jax
import jax.numpy as jnp
from jax.experimental import pallas as pl
from jax.experimental.pallas import tpu as pltpu


# ----------------------------- Fused Pallas kernel ------------------------------

def _ner_fused_kernel(ids_ref, emb_ref, w1b1_ref, wihb_ref, whh_ref, w2b2_ref,
                      out_ref, *, S, B, E, Hp, RB):
    f32 = jnp.float32
    Np = S * RB
    V = emb_ref.shape[0]

    # Row-role masks within each RB-row step block (fwd rows 0..B-1, bwd rows B..2B-1).
    blk_row = jax.lax.broadcasted_iota(jnp.int32, (Np, 1), 0) & (RB - 1)
    fwd_rows_all = (blk_row < B).astype(f32)                                   # (Np, 1)
    bwd_rows_all = ((blk_row >= B) & (blk_row < 2 * B)).astype(f32)

    # ---- embedding gather via one-hot matmul (table resident in VMEM) ----
    ids = ids_ref[...]                                                         # (Np, 1) int32
    onehot = (jax.lax.broadcasted_iota(jnp.int32, (Np, V), 1) == ids).astype(f32)
    x = jnp.dot(onehot, emb_ref[...], preferred_element_type=f32)              # (Np, E)

    # ---- linear_1 + dropout(identity) + ReLU ----
    h1 = jnp.maximum(
        jnp.dot(x, w1b1_ref[0:E, :], preferred_element_type=f32) + w1b1_ref[E:E + 1, :],
        0.0)                                                                   # (Np, E)

    # ---- fused (fwd|bwd) LSTM input projections: ONE matmul for both directions ----
    # h1_bd rows: fwd rows carry h1 in cols [0,E), bwd rows in cols [E,2E); pad rows = 0.
    h1_bd = jnp.concatenate([h1 * fwd_rows_all, h1 * bwd_rows_all], axis=1)    # (Np, 2E)
    gi = jnp.dot(h1_bd, wihb_ref[0:2 * E, :], preferred_element_type=f32)      # (Np, 4Hp)

    # Per-step-block combined bias (fwd bias rows 0..B-1, bwd rows B..2B-1), hoisted.
    blk8 = jax.lax.broadcasted_iota(jnp.int32, (RB, 1), 0)
    f_rows = (blk8 < B).astype(f32)                                            # (RB, 1)
    b_rows = ((blk8 >= B) & (blk8 < 2 * B)).astype(f32)
    bias_blk = (wihb_ref[2 * E:2 * E + 1, :] * f_rows
                + wihb_ref[2 * E + 8:2 * E + 9, :] * b_rows)                   # (RB, 4Hp)

    # ---- BiLSTM recurrence: both directions share ONE block-diag matmul per step ----
    whh = whh_ref[...]                                                         # (2Hp, 4Hp) bf16
    c = jnp.zeros((RB, Hp), f32)
    h_bd = jnp.zeros((RB, 2 * Hp), jnp.bfloat16)
    hs = []
    for s in range(S):                                    # fully unrolled (S static)
        g = (gi[s * RB:(s + 1) * RB, :] + bias_blk
             + jnp.dot(h_bd, whh, preferred_element_type=f32))                 # (RB, 4Hp)
        # PyTorch gate order i, f, g, o; each gate 128-lane aligned.
        i_g = jax.nn.sigmoid(g[:, 0 * Hp:1 * Hp])
        f_g = jax.nn.sigmoid(g[:, 1 * Hp:2 * Hp])
        g_g = jnp.tanh(g[:, 2 * Hp:3 * Hp])
        o_g = jax.nn.sigmoid(g[:, 3 * Hp:4 * Hp])
        c = f_g * c + i_g * g_g
        h = o_g * jnp.tanh(c)                                                  # (RB, Hp) f32
        hs.append(h)
        # Block-diagonal feedback: fwd rows -> lanes [0,Hp), bwd rows -> lanes [Hp,2Hp).
        h_bd = jnp.concatenate([h * f_rows, h * b_rows], axis=1).astype(jnp.bfloat16)

    # ---- time-align fwd/bwd hidden states, fused linear_2 + sigmoid ----
    # fwd hidden for time t is at step t (rows 0..B-1); bwd hidden for time t is at
    # step S-1-t (rows B..2B-1).  Pairing is done at trace time (Python indices).
    h_cat = jnp.concatenate(
        [jnp.concatenate([hs[t][0:B, :], hs[S - 1 - t][B:2 * B, :]], axis=1)
         for t in range(S)], axis=0)                                           # (S*B, 2Hp)
    logits = (jnp.dot(h_cat, w2b2_ref[0:2 * Hp, :], preferred_element_type=f32)
              + w2b2_ref[2 * Hp:2 * Hp + 1, :])                                # (S*B, Cp)
    out_ref[...] = jax.nn.sigmoid(logits)


def ner_fused(ids, emb, w1b1, wihb, whh, w2b2, *, S, B, E, Hp, Cp, RB):
    kernel = functools.partial(_ner_fused_kernel, S=S, B=B, E=E, Hp=Hp, RB=RB)
    vspec = lambda: pl.BlockSpec(memory_space=pltpu.MemorySpace.VMEM)
    return pl.pallas_call(
        kernel,
        out_shape=jax.ShapeDtypeStruct((S * B, Cp), jnp.float32),
        in_specs=[vspec() for _ in range(6)],
        out_specs=vspec(),
    )(ids, emb, w1b1, wihb, whh, w2b2)


# --------------------------- One-time weight packing -----------------------------

def pack_params(params):
    """Pack / pad weights into a few lane-aligned slabs.  Run ONCE, outside the
    per-call jit (the packing HLO would otherwise dominate this tiny model)."""
    f32 = jnp.float32
    E = params["emb"].shape[1]
    H = params["whh_f"].shape[1]
    C = params["w2"].shape[0]
    Hp = ((H + 127) // 128) * 128      # per-gate lane width
    Cp = ((C + 127) // 128) * 128      # lane-dense output width

    def pad_gate_cols(w_t):            # (K, 4H) -> (K, 4Hp): gate k at lanes [k*Hp, k*Hp+H)
        K = w_t.shape[0]
        out = jnp.zeros((K, 4 * Hp), f32)
        for k in range(4):
            out = out.at[:, k * Hp:k * Hp + H].set(w_t[:, k * H:(k + 1) * H])
        return out

    # wih + bias slab: rows [0:E]=wih_f^T, [E:2E]=wih_b^T, [2E]=bias_f, [2E+8]=bias_b.
    wihb = jnp.zeros((2 * E + 16, 4 * Hp), f32)
    wihb = wihb.at[0:E].set(pad_gate_cols(params["wih_f"].T.astype(f32)))
    wihb = wihb.at[E:2 * E].set(pad_gate_cols(params["wih_b"].T.astype(f32)))
    wihb = wihb.at[2 * E:2 * E + 1].set(
        pad_gate_cols((params["bih_f"] + params["bhh_f"]).reshape(1, 4 * H).astype(f32)))
    wihb = wihb.at[2 * E + 8:2 * E + 9].set(
        pad_gate_cols((params["bih_b"] + params["bhh_b"]).reshape(1, 4 * H).astype(f32)))

    # Stacked recurrent weights (bf16): rows [0:H]=whh_f^T, [Hp:Hp+H]=whh_b^T.
    whh = jnp.zeros((2 * Hp, 4 * Hp), f32)
    whh = whh.at[0:H].set(pad_gate_cols(params["whh_f"].T.astype(f32)))
    whh = whh.at[Hp:Hp + H].set(pad_gate_cols(params["whh_b"].T.astype(f32)))
    whh = whh.astype(jnp.bfloat16)

    # linear_1 slab: rows [0:E]=w1^T, row [E]=b1.
    w1b1 = jnp.zeros((E + 8, E), f32)
    w1b1 = w1b1.at[0:E].set(params["w1"].T.astype(f32))
    w1b1 = w1b1.at[E].set(params["b1"].astype(f32))

    # linear_2 slab: rows [0:H]=w2[:, :H]^T, rows [Hp:Hp+H]=w2[:, H:]^T, row [2Hp]=b2.
    w2 = params["w2"].astype(f32)
    w2b2 = jnp.zeros((2 * Hp + 8, Cp), f32)
    w2b2 = w2b2.at[0:H, 0:C].set(w2[:, :H].T)
    w2b2 = w2b2.at[Hp:Hp + H, 0:C].set(w2[:, H:].T)
    w2b2 = w2b2.at[2 * Hp, 0:C].set(params["b2"].astype(f32))

    return dict(emb=params["emb"].astype(f32), w1b1=w1b1, wihb=wihb, whh=whh, w2b2=w2b2)


# ----------------------------- Model wrapper -------------------------------

def init_params(key, vocab_size, embed_size, hidden_size, num_classes):
    ks = jax.random.split(key, 12)
    u = lambda k, shape: jax.random.uniform(k, shape, jnp.float32, -0.1, 0.1)
    E, H, C = embed_size, hidden_size, num_classes
    return dict(
        emb=u(ks[0], (vocab_size, E)),
        w1=u(ks[1], (E, E)), b1=u(ks[2], (E,)),
        wih_f=u(ks[3], (4 * H, E)), whh_f=u(ks[4], (4 * H, H)),
        bih_f=u(ks[5], (4 * H,)), bhh_f=u(ks[6], (4 * H,)),
        wih_b=u(ks[7], (4 * H, E)), whh_b=u(ks[8], (4 * H, H)),
        bih_b=u(ks[9], (4 * H,)), bhh_b=u(ks[10], (4 * H,)),
        w2=u(ks[11], (C, 2 * H)), b2=jnp.zeros((C,), jnp.float32),
    )


@functools.partial(jax.jit, static_argnames=("num_classes",))
def named_entity_forward(input_ids, packed, *, num_classes):
    B, S = input_ids.shape
    E = packed["emb"].shape[1]
    Hp = packed["whh"].shape[0] // 2
    Cp = packed["w2b2"].shape[1]
    RB = ((2 * B + 7) // 8) * 8        # rows per step block, padded to 8 sublanes

    # Step-block-arranged token ids: for step s, rows [0..B-1] = tokens at time s (fwd),
    # rows [B..2B-1] = tokens at time S-1-s (bwd), remaining rows = -1 (padding).
    ids_t = input_ids.astype(jnp.int32).T                  # (S, B) time-major
    pieces = [ids_t, ids_t[::-1, :]]
    if RB > 2 * B:
        pieces.append(jnp.full((S, RB - 2 * B), -1, jnp.int32))
    ids_arr = jnp.concatenate(pieces, axis=1).reshape(S * RB, 1)

    out2d = ner_fused(ids_arr, packed["emb"], packed["w1b1"], packed["wihb"],
                      packed["whh"], packed["w2b2"],
                      S=S, B=B, E=E, Hp=Hp, Cp=Cp, RB=RB)   # (S*B, Cp)

    out = out2d.reshape(S, B, Cp)[:, :, :num_classes]       # drop lane padding
    return jnp.transpose(out, (1, 0, 2))                    # (B, S, C)


# --------------------------- Pure-JAX reference ----------------------------

def reference_forward(input_ids, params):
    B, S = input_ids.shape
    H = params["whh_f"].shape[1]
    emb = jnp.take(params["emb"], input_ids, axis=0)
    h1 = jax.nn.relu(emb @ params["w1"].T + params["b1"])

    def lstm_dir(x_tm, wih, whh, bih, bhh):
        def step(carry, x_t):
            h, c = carry
            gates = x_t @ wih.T + h @ whh.T + bih + bhh
            i, f, g, o = jnp.split(gates, 4, axis=-1)
            c = jax.nn.sigmoid(f) * c + jax.nn.sigmoid(i) * jnp.tanh(g)
            h = jax.nn.sigmoid(o) * jnp.tanh(c)
            return (h, c), h
        h0 = jnp.zeros((x_tm.shape[1], H), jnp.float32)
        _, hs = jax.lax.scan(step, (h0, h0), x_tm)
        return hs

    x_tm = jnp.transpose(h1, (1, 0, 2))
    fwd = lstm_dir(x_tm, params["wih_f"], params["whh_f"], params["bih_f"], params["bhh_f"])
    bwd = lstm_dir(x_tm[::-1], params["wih_b"], params["whh_b"], params["bih_b"], params["bhh_b"])[::-1]
    lstm_out = jnp.transpose(jnp.concatenate([fwd, bwd], -1), (1, 0, 2))
    return jax.nn.sigmoid(lstm_out @ params["w2"].T + params["b2"])


# --------------------------------- Main -------------------------------------

if __name__ == "__main__":
    VOCAB, EMBED, HIDDEN, CLASSES = 50, 32, 32, 8
    B, S = 2, 8

    key = jax.random.PRNGKey(0)
    k_param, k_inp = jax.random.split(key)
    params = init_params(k_param, VOCAB, EMBED, HIDDEN, CLASSES)
    input_ids = jax.random.randint(k_inp, (B, S), 0, VOCAB, dtype=jnp.int32)

    packed = pack_params(params)                    # one-time packing, outside forward jit

    out = named_entity_forward(input_ids, packed, num_classes=CLASSES)
    out = jax.block_until_ready(out)

    ref = jax.block_until_ready(reference_forward(input_ids, params))
    assert out.shape == (B, S, CLASSES)
    # bf16 recurrent matmul -> relaxed tolerance (prologue/epilogue stay f32).
    np.testing.assert_allclose(np.asarray(out), np.asarray(ref), atol=5e-3, rtol=5e-3)

    print("KERNEL_OK")
</pallas_src>

<mosaic_0001>
module attributes {stable_mosaic.version = 11 : i64} {
  func.func @_ner_fused_kernel(%arg0: memref<64x1xi32, #tpu.memory_space<vmem>>, %arg1: memref<50x32xf32, #tpu.memory_space<vmem>>, %arg2: memref<40x32xf32, #tpu.memory_space<vmem>>, %arg3: memref<80x512xf32, #tpu.memory_space<vmem>>, %arg4: memref<256x512xbf16, #tpu.memory_space<vmem>>, %arg5: memref<264x128xf32, #tpu.memory_space<vmem>>, %arg6: memref<16x128xf32, #tpu.memory_space<vmem>>) attributes {dimension_semantics = [], scalar_prefetch = 0 : i64, scratch_operands = 0 : i64, tpu.core_type = #tpu.core_type<tc>} {
    %0 = tpu.iota {dimensions = array<i32: 0>} : vector<64x1xi32>
    %c7_i32 = arith.constant 7 : i32
    %1 = vector.broadcast %c7_i32 : i32 to vector<64x1xi32>
    %2 = arith.andi %0, %1 : vector<64x1xi32>
    %c2_i32 = arith.constant 2 : i32
    %3 = vector.broadcast %c2_i32 : i32 to vector<64x1xi32>
    %4 = arith.cmpi slt, %2, %3 : vector<64x1xi32>
    %5 = arith.extui %4 : vector<64x1xi1> to vector<64x1xi32>
    %6 = arith.sitofp %5 : vector<64x1xi32> to vector<64x1xf32>
    %c2_i32_0 = arith.constant 2 : i32
    %7 = vector.broadcast %c2_i32_0 : i32 to vector<64x1xi32>
    %8 = arith.cmpi sge, %2, %7 : vector<64x1xi32>
    %c4_i32 = arith.constant 4 : i32
    %9 = vector.broadcast %c4_i32 : i32 to vector<64x1xi32>
    %10 = arith.cmpi slt, %2, %9 : vector<64x1xi32>
    %11 = arith.andi %8, %10 : vector<64x1xi1>
    %12 = arith.extui %11 : vector<64x1xi1> to vector<64x1xi32>
    %13 = arith.sitofp %12 : vector<64x1xi32> to vector<64x1xf32>
    %c0 = arith.constant 0 : index
    %c0_1 = arith.constant 0 : index
    %14 = vector.load %arg0[%c0, %c0_1] : memref<64x1xi32, #tpu.memory_space<vmem>>, vector<64x1xi32>
    %15 = tpu.iota {dimensions = array<i32: 1>} : vector<64x50xi32>
    %16 = vector.broadcast %14 : vector<64x1xi32> to vector<64x50xi32>
    %17 = arith.cmpi eq, %15, %16 : vector<64x50xi32>
    %18 = arith.extui %17 : vector<64x50xi1> to vector<64x50xi32>
    %19 = arith.sitofp %18 : vector<64x50xi32> to vector<64x50xf32>
    %c0_2 = arith.constant 0 : index
    %c0_3 = arith.constant 0 : index
    %20 = vector.load %arg1[%c0_2, %c0_3] : memref<50x32xf32, #tpu.memory_space<vmem>>, vector<50x32xf32>
    %cst = arith.constant dense<0.000000e+00> : vector<64x32xf32>
    %21 = tpu.matmul %19, %20, %cst {dimension_numbers = #tpu.dot_dimension_numbers<[1], [0], [0], [1], [0, 0, 1, 1], [], []>} : vector<64x50xf32>, vector<50x32xf32>, vector<64x32xf32> -> vector<64x32xf32>
    %c0_4 = arith.constant 0 : index
    %c0_5 = arith.constant 0 : index
    %22 = vector.load %arg2[%c0_4, %c0_5] : memref<40x32xf32, #tpu.memory_space<vmem>>, vector<32x32xf32>
    %cst_6 = arith.constant dense<0.000000e+00> : vector<64x32xf32>
    %23 = tpu.matmul %21, %22, %cst_6 {dimension_numbers = #tpu.dot_dimension_numbers<[1], [0], [0], [1], [0, 0, 1, 1], [], []>} : vector<64x32xf32>, vector<32x32xf32>, vector<64x32xf32> -> vector<64x32xf32>
    %c32 = arith.constant 32 : index
    %c0_7 = arith.constant 0 : index
    %24 = vector.load %arg2[%c32, %c0_7] : memref<40x32xf32, #tpu.memory_space<vmem>>, vector<1x32xf32>
    %25 = vector.broadcast %24 : vector<1x32xf32> to vector<64x32xf32>
    %26 = arith.addf %23, %25 : vector<64x32xf32>
    %cst_8 = arith.constant 0.000000e+00 : f32
    %27 = vector.broadcast %cst_8 : f32 to vector<64x32xf32>
    %28 = arith.maximumf %26, %27 : vector<64x32xf32>
    %29 = vector.broadcast %6 : vector<64x1xf32> to vector<64x32xf32>
    %30 = arith.mulf %28, %29 : vector<64x32xf32>
    %31 = vector.broadcast %13 : vector<64x1xf32> to vector<64x32xf32>
    %32 = arith.mulf %28, %31 : vector<64x32xf32>
    %33 = tpu.concatenate %30, %32 in 1 : vector<64x32xf32>, vector<64x32xf32> -> vector<64x64xf32>
    %c0_9 = arith.constant 0 : index
    %c0_10 = arith.constant 0 : index
    %34 = vector.load %arg3[%c0_9, %c0_10] : memref<80x512xf32, #tpu.memory_space<vmem>>, vector<64x512xf32>
    %cst_11 = arith.constant dense<0.000000e+00> : vector<64x512xf32>
    %35 = tpu.matmul %33, %34, %cst_11 {dimension_numbers = #tpu.dot_dimension_numbers<[1], [0], [0], [1], [0, 0, 1, 1], [], []>} : vector<64x64xf32>, vector<64x512xf32>, vector<64x512xf32> -> vector<64x512xf32>
    %36 = tpu.iota {dimensions = array<i32: 0>} : vector<8x1xi32>
    %c2_i32_12 = arith.constant 2 : i32
    %37 = vector.broadcast %c2_i32_12 : i32 to vector<8x1xi32>
    %38 = arith.cmpi slt, %36, %37 : vector<8x1xi32>
    %39 = arith.extui %38 : vector<8x1xi1> to vector<8x1xi32>
    %40 = arith.sitofp %39 : vector<8x1xi32> to vector<8x1xf32>
    %c2_i32_13 = arith.constant 2 : i32
    %41 = vector.broadcast %c2_i32_13 : i32 to vector<8x1xi32>
    %42 = arith.cmpi sge, %36, %41 : vector<8x1xi32>
    %c4_i32_14 = arith.constant 4 : i32
    %43 = vector.broadcast %c4_i32_14 : i32 to vector<8x1xi32>
    %44 = arith.cmpi slt, %36, %43 : vector<8x1xi32>
    %45 = arith.andi %42, %44 : vector<8x1xi1>
    %46 = arith.extui %45 : vector<8x1xi1> to vector<8x1xi32>
    %47 = arith.sitofp %46 : vector<8x1xi32> to vector<8x1xf32>
    %c64 = arith.constant 64 : index
    %c0_15 = arith.constant 0 : index
    %48 = vector.load %arg3[%c64, %c0_15] : memref<80x512xf32, #tpu.memory_space<vmem>>, vector<1x512xf32>
    %49 = vector.broadcast %48 : vector<1x512xf32> to vector<8x512xf32>
    %50 = vector.broadcast %40 : vector<8x1xf32> to vector<8x512xf32>
    %51 = arith.mulf %49, %50 : vector<8x512xf32>
    %c72 = arith.constant 72 : index
    %c0_16 = arith.constant 0 : index
    %52 = vector.load %arg3[%c72, %c0_16] : memref<80x512xf32, #tpu.memory_space<vmem>>, vector<1x512xf32>
    %53 = vector.broadcast %52 : vector<1x512xf32> to vector<8x512xf32>
    %54 = vector.broadcast %47 : vector<8x1xf32> to vector<8x512xf32>
    %55 = arith.mulf %53, %54 : vector<8x512xf32>
    %56 = arith.addf %51, %55 : vector<8x512xf32>
    %c0_17 = arith.constant 0 : index
    %c0_18 = arith.constant 0 : index
    %57 = vector.load %arg4[%c0_17, %c0_18] : memref<256x512xbf16, #tpu.memory_space<vmem>>, vector<256x512xbf16>
    %cst_19 = arith.constant 0.000000e+00 : f32
    %58 = vector.broadcast %cst_19 : f32 to vector<8x128xf32>
    %cst_20 = arith.constant 0.000000e+00 : bf16
    %59 = vector.broadcast %cst_20 : bf16 to vector<8x256xbf16>
    %60 = vector.extract_strided_slice %35 {offsets = [0, 0], sizes = [8, 512], strides = [1, 1]} : vector<64x512xf32> to vector<8x512xf32>
    %61 = arith.addf %60, %56 : vector<8x512xf32>
    %cst_21 = arith.constant dense<0.000000e+00> : vector<8x512xf32>
    %62 = tpu.matmul %59, %57, %cst_21 {dimension_numbers = #tpu.dot_dimension_numbers<[1], [0], [0], [1], [0, 0, 1, 1], [], []>} : vector<8x256xbf16>, vector<256x512xbf16>, vector<8x512xf32> -> vector<8x512xf32>
    %63 = arith.addf %61, %62 : vector<8x512xf32>
    %64 = vector.extract_strided_slice %63 {offsets = [0, 0], sizes = [8, 128], strides = [1, 1]} : vector<8x512xf32> to vector<8x128xf32>
    %65 = arith.negf %64 : vector<8x128xf32>
    %66 = math.exp %65 : vector<8x128xf32>
    %cst_22 = arith.constant 1.000000e+00 : f32
    %67 = vector.broadcast %cst_22 : f32 to vector<8x128xf32>
    %68 = arith.addf %67, %66 : vector<8x128xf32>
    %69 = arith.divf %67, %68 : vector<8x128xf32>
    %70 = vector.extract_strided_slice %63 {offsets = [0, 128], sizes = [8, 128], strides = [1, 1]} : vector<8x512xf32> to vector<8x128xf32>
    %71 = arith.negf %70 : vector<8x128xf32>
    %72 = math.exp %71 : vector<8x128xf32>
    %cst_23 = arith.constant 1.000000e+00 : f32
    %73 = vector.broadcast %cst_23 : f32 to vector<8x128xf32>
    %74 = arith.addf %73, %72 : vector<8x128xf32>
    %75 = arith.divf %73, %74 : vector<8x128xf32>
    %76 = vector.extract_strided_slice %63 {offsets = [0, 256], sizes = [8, 128], strides = [1, 1]} : vector<8x512xf32> to vector<8x128xf32>
    %77 = math.tanh %76 : vector<8x128xf32>
    %78 = vector.extract_strided_slice %63 {offsets = [0, 384], sizes = [8, 128], strides = [1, 1]} : vector<8x512xf32> to vector<8x128xf32>
    %79 = arith.negf %78 : vector<8x128xf32>
    %80 = math.exp %79 : vector<8x128xf32>
    %cst_24 = arith.constant 1.000000e+00 : f32
    %81 = vector.broadcast %cst_24 : f32 to vector<8x128xf32>
    %82 = arith.addf %81, %80 : vector<8x128xf32>
    %83 = arith.divf %81, %82 : vector<8x128xf32>
    %84 = arith.mulf %75, %58 : vector<8x128xf32>
    %85 = arith.mulf %69, %77 : vector<8x128xf32>
    %86 = arith.addf %84, %85 : vector<8x128xf32>
    %87 = math.tanh %86 : vector<8x128xf32>
    %88 = arith.mulf %83, %87 : vector<8x128xf32>
    %89 = vector.broadcast %40 : vector<8x1xf32> to vector<8x128xf32>
    %90 = arith.mulf %88, %89 : vector<8x128xf32>
    %91 = vector.broadcast %47 : vector<8x1xf32> to vector<8x128xf32>
    %92 = arith.mulf %88, %91 : vector<8x128xf32>
    %93 = tpu.concatenate %90, %92 in 1 : vector<8x128xf32>, vector<8x128xf32> -> vector<8x256xf32>
    %94 = arith.truncf %93 : vector<8x256xf32> to vector<8x256xbf16>
    %95 = vector.extract_strided_slice %35 {offsets = [8, 0], sizes = [8, 512], strides = [1, 1]} : vector<64x512xf32> to vector<8x512xf32>
    %96 = arith.addf %95, %56 : vector<8x512xf32>
    %cst_25 = arith.constant dense<0.000000e+00> : vector<8x512xf32>
    %97 = tpu.matmul %94, %57, %cst_25 {dimension_numbers = #tpu.dot_dimension_numbers<[1], [0], [0], [1], [0, 0, 1, 1], [], []>} : vector<8x256xbf16>, vector<256x512xbf16>, vector<8x512xf32> -> vector<8x512xf32>
    %98 = arith.addf %96, %97 : vector<8x512xf32>
    %99 = vector.extract_strided_slice %98 {offsets = [0, 0], sizes = [8, 128], strides = [1, 1]} : vector<8x512xf32> to vector<8x128xf32>
    %100 = arith.negf %99 : vector<8x128xf32>
    %101 = math.exp %100 : vector<8x128xf32>
    %cst_26 = arith.constant 1.000000e+00 : f32
    %102 = vector.broadcast %cst_26 : f32 to vector<8x128xf32>
    %103 = arith.addf %102, %101 : vector<8x128xf32>
    %104 = arith.divf %102, %103 : vector<8x128xf32>
    %105 = vector.extract_strided_slice %98 {offsets = [0, 128], sizes = [8, 128], strides = [1, 1]} : vector<8x512xf32> to vector<8x128xf32>
    %106 = arith.negf %105 : vector<8x128xf32>
    %107 = math.exp %106 : vector<8x128xf32>
    %cst_27 = arith.constant 1.000000e+00 : f32
    %108 = vector.broadcast %cst_27 : f32 to vector<8x128xf32>
    %109 = arith.addf %108, %107 : vector<8x128xf32>
    %110 = arith.divf %108, %109 : vector<8x128xf32>
    %111 = vector.extract_strided_slice %98 {offsets = [0, 256], sizes = [8, 128], strides = [1, 1]} : vector<8x512xf32> to vector<8x128xf32>
    %112 = math.tanh %111 : vector<8x128xf32>
    %113 = vector.extract_strided_slice %98 {offsets = [0, 384], sizes = [8, 128], strides = [1, 1]} : vector<8x512xf32> to vector<8x128xf32>
    %114 = arith.negf %113 : vector<8x128xf32>
    %115 = math.exp %114 : vector<8x128xf32>
    %cst_28 = arith.constant 1.000000e+00 : f32
    %116 = vector.broadcast %cst_28 : f32 to vector<8x128xf32>
    %117 = arith.addf %116, %115 : vector<8x128xf32>
    %118 = arith.divf %116, %117 : vector<8x128xf32>
    %119 = arith.mulf %110, %86 : vector<8x128xf32>
    %120 = arith.mulf %104, %112 : vector<8x128xf32>
    %121 = arith.addf %119, %120 : vector<8x128xf32>
    %122 = math.tanh %121 : vector<8x128xf32>
    %123 = arith.mulf %118, %122 : vector<8x128xf32>
    %124 = vector.broadcast %40 : vector<8x1xf32> to vector<8x128xf32>
    %125 = arith.mulf %123, %124 : vector<8x128xf32>
    %126 = vector.broadcast %47 : vector<8x1xf32> to vector<8x128xf32>
    %127 = arith.mulf %123, %126 : vector<8x128xf32>
    %128 = tpu.concatenate %125, %127 in 1 : vector<8x128xf32>, vector<8x128xf32> -> vector<8x256xf32>
    %129 = arith.truncf %128 : vector<8x256xf32> to vector<8x256xbf16>
    %130 = vector.extract_strided_slice %35 {offsets = [16, 0], sizes = [8, 512], strides = [1, 1]} : vector<64x512xf32> to vector<8x512xf32>
    %131 = arith.addf %130, %56 : vector<8x512xf32>
    %cst_29 = arith.constant dense<0.000000e+00> : vector<8x512xf32>
    %132 = tpu.matmul %129, %57, %cst_29 {dimension_numbers = #tpu.dot_dimension_numbers<[1], [0], [0], [1], [0, 0, 1, 1], [], []>} : vector<8x256xbf16>, vector<256x512xbf16>, vector<8x512xf32> -> vector<8x512xf32>
    %133 = arith.addf %131, %132 : vector<8x512xf32>
    %134 = vector.extract_strided_slice %133 {offsets = [0, 0], sizes = [8, 128], strides = [1, 1]} : vector<8x512xf32> to vector<8x128xf32>
    %135 = arith.negf %134 : vector<8x128xf32>
    %136 = math.exp %135 : vector<8x128xf32>
    %cst_30 = arith.constant 1.000000e+00 : f32
    %137 = vector.broadcast %cst_30 : f32 to vector<8x128xf32>
    %138 = arith.addf %137, %136 : vector<8x128xf32>
    %139 = arith.divf %137, %138 : vector<8x128xf32>
    %140 = vector.extract_strided_slice %133 {offsets = [0, 128], sizes = [8, 128], strides = [1, 1]} : vector<8x512xf32> to vector<8x128xf32>
    %141 = arith.negf %140 : vector<8x128xf32>
    %142 = math.exp %141 : vector<8x128xf32>
    %cst_31 = arith.constant 1.000000e+00 : f32
    %143 = vector.broadcast %cst_31 : f32 to vector<8x128xf32>
    %144 = arith.addf %143, %142 : vector<8x128xf32>
    %145 = arith.divf %143, %144 : vector<8x128xf32>
    %146 = vector.extract_strided_slice %133 {offsets = [0, 256], sizes = [8, 128], strides = [1, 1]} : vector<8x512xf32> to vector<8x128xf32>
    %147 = math.tanh %146 : vector<8x128xf32>
    %148 = vector.extract_strided_slice %133 {offsets = [0, 384], sizes = [8, 128], strides = [1, 1]} : vector<8x512xf32> to vector<8x128xf32>
    %149 = arith.negf %148 : vector<8x128xf32>
    %150 = math.exp %149 : vector<8x128xf32>
    %cst_32 = arith.constant 1.000000e+00 : f32
    %151 = vector.broadcast %cst_32 : f32 to vector<8x128xf32>
    %152 = arith.addf %151, %150 : vector<8x128xf32>
    %153 = arith.divf %151, %152 : vector<8x128xf32>
    %154 = arith.mulf %145, %121 : vector<8x128xf32>
    %155 = arith.mulf %139, %147 : vector<8x128xf32>
    %156 = arith.addf %154, %155 : vector<8x128xf32>
    %157 = math.tanh %156 : vector<8x128xf32>
    %158 = arith.mulf %153, %157 : vector<8x128xf32>
    %159 = vector.broadcast %40 : vector<8x1xf32> to vector<8x128xf32>
    %160 = arith.mulf %158, %159 : vector<8x128xf32>
    %161 = vector.broadcast %47 : vector<8x1xf32> to vector<8x128xf32>
    %162 = arith.mulf %158, %161 : vector<8x128xf32>
    %163 = tpu.concatenate %160, %162 in 1 : vector<8x128xf32>, vector<8x128xf32> -> vector<8x256xf32>
    %164 = arith.truncf %163 : vector<8x256xf32> to vector<8x256xbf16>
    %165 = vector.extract_strided_slice %35 {offsets = [24, 0], sizes = [8, 512], strides = [1, 1]} : vector<64x512xf32> to vector<8x512xf32>
    %166 = arith.addf %165, %56 : vector<8x512xf32>
    %cst_33 = arith.constant dense<0.000000e+00> : vector<8x512xf32>
    %167 = tpu.matmul %164, %57, %cst_33 {dimension_numbers = #tpu.dot_dimension_numbers<[1], [0], [0], [1], [0, 0, 1, 1], [], []>} : vector<8x256xbf16>, vector<256x512xbf16>, vector<8x512xf32> -> vector<8x512xf32>
    %168 = arith.addf %166, %167 : vector<8x512xf32>
    %169 = vector.extract_strided_slice %168 {offsets = [0, 0], sizes = [8, 128], strides = [1, 1]} : vector<8x512xf32> to vector<8x128xf32>
    %170 = arith.negf %169 : vector<8x128xf32>
    %171 = math.exp %170 : vector<8x128xf32>
    %cst_34 = arith.constant 1.000000e+00 : f32
    %172 = vector.broadcast %cst_34 : f32 to vector<8x128xf32>
    %173 = arith.addf %172, %171 : vector<8x128xf32>
    %174 = arith.divf %172, %173 : vector<8x128xf32>
    %175 = vector.extract_strided_slice %168 {offsets = [0, 128], sizes = [8, 128], strides = [1, 1]} : vector<8x512xf32> to vector<8x128xf32>
    %176 = arith.negf %175 : vector<8x128xf32>
    %177 = math.exp %176 : vector<8x128xf32>
    %cst_35 = arith.constant 1.000000e+00 : f32
    %178 = vector.broadcast %cst_35 : f32 to vector<8x128xf32>
    %179 = arith.addf %178, %177 : vector<8x128xf32>
    %180 = arith.divf %178, %179 : vector<8x128xf32>
    %181 = vector.extract_strided_slice %168 {offsets = [0, 256], sizes = [8, 128], strides = [1, 1]} : vector<8x512xf32> to vector<8x128xf32>
    %182 = math.tanh %181 : vector<8x128xf32>
    %183 = vector.extract_strided_slice %168 {offsets = [0, 384], sizes = [8, 128], strides = [1, 1]} : vector<8x512xf32> to vector<8x128xf32>
    %184 = arith.negf %183 : vector<8x128xf32>
    %185 = math.exp %184 : vector<8x128xf32>
    %cst_36 = arith.constant 1.000000e+00 : f32
    %186 = vector.broadcast %cst_36 : f32 to vector<8x128xf32>
    %187 = arith.addf %186, %185 : vector<8x128xf32>
    %188 = arith.divf %186, %187 : vector<8x128xf32>
    %189 = arith.mulf %180, %156 : vector<8x128xf32>
    %190 = arith.mulf %174, %182 : vector<8x128xf32>
    %191 = arith.addf %189, %190 : vector<8x128xf32>
    %192 = math.tanh %191 : vector<8x128xf32>
    %193 = arith.mulf %188, %192 : vector<8x128xf32>
    %194 = vector.broadcast %40 : vector<8x1xf32> to vector<8x128xf32>
    %195 = arith.mulf %193, %194 : vector<8x128xf32>
    %196 = vector.broadcast %47 : vector<8x1xf32> to vector<8x128xf32>
    %197 = arith.mulf %193, %196 : vector<8x128xf32>
    %198 = tpu.concatenate %195, %197 in 1 : vector<8x128xf32>, vector<8x128xf32> -> vector<8x256xf32>
    %199 = arith.truncf %198 : vector<8x256xf32> to vector<8x256xbf16>
    %200 = vector.extract_strided_slice %35 {offsets = [32, 0], sizes = [8, 512], strides = [1, 1]} : vector<64x512xf32> to vector<8x512xf32>
    %201 = arith.addf %200, %56 : vector<8x512xf32>
    %cst_37 = arith.constant dense<0.000000e+00> : vector<8x512xf32>
    %202 = tpu.matmul %199, %57, %cst_37 {dimension_numbers = #tpu.dot_dimension_numbers<[1], [0], [0], [1], [0, 0, 1, 1], [], []>} : vector<8x256xbf16>, vector<256x512xbf16>, vector<8x512xf32> -> vector<8x512xf32>
    %203 = arith.addf %201, %202 : vector<8x512xf32>
    %204 = vector.extract_strided_slice %203 {offsets = [0, 0], sizes = [8, 128], strides = [1, 1]} : vector<8x512xf32> to vector<8x128xf32>
    %205 = arith.negf %204 : vector<8x128xf32>
    %206 = math.exp %205 : vector<8x128xf32>
    %cst_38 = arith.constant 1.000000e+00 : f32
    %207 = vector.broadcast %cst_38 : f32 to vector<8x128xf32>
    %208 = arith.addf %207, %206 : vector<8x128xf32>
    %209 = arith.divf %207, %208 : vector<8x128xf32>
    %210 = vector.extract_strided_slice %203 {offsets = [0, 128], sizes = [8, 128], strides = [1, 1]} : vector<8x512xf32> to vector<8x128xf32>
    %211 = arith.negf %210 : vector<8x128xf32>
    %212 = math.exp %211 : vector<8x128xf32>
    %cst_39 = arith.constant 1.000000e+00 : f32
    %213 = vector.broadcast %cst_39 : f32 to vector<8x128xf32>
    %214 = arith.addf %213, %212 : vector<8x128xf32>
    %215 = arith.divf %213, %214 : vector<8x128xf32>
    %216 = vector.extract_strided_slice %203 {offsets = [0, 256], sizes = [8, 128], strides = [1, 1]} : vector<8x512xf32> to vector<8x128xf32>
    %217 = math.tanh %216 : vector<8x128xf32>
    %218 = vector.extract_strided_slice %203 {offsets = [0, 384], sizes = [8, 128], strides = [1, 1]} : vector<8x512xf32> to vector<8x128xf32>
    %219 = arith.negf %218 : vector<8x128xf32>
    %220 = math.exp %219 : vector<8x128xf32>
    %cst_40 = arith.constant 1.000000e+00 : f32
    %221 = vector.broadcast %cst_40 : f32 to vector<8x128xf32>
    %222 = arith.addf %221, %220 : vector<8x128xf32>
    %223 = arith.divf %221, %222 : vector<8x128xf32>
    %224 = arith.mulf %215, %191 : vector<8x128xf32>
    %225 = arith.mulf %209, %217 : vector<8x128xf32>
    %226 = arith.addf %224, %225 : vector<8x128xf32>
    %227 = math.tanh %226 : vector<8x128xf32>
    %228 = arith.mulf %223, %227 : vector<8x128xf32>
    %229 = vector.broadcast %40 : vector<8x1xf32> to vector<8x128xf32>
    %230 = arith.mulf %228, %229 : vector<8x128xf32>
    %231 = vector.broadcast %47 : vector<8x1xf32> to vector<8x128xf32>
    %232 = arith.mulf %228, %231 : vector<8x128xf32>
    %233 = tpu.concatenate %230, %232 in 1 : vector<8x128xf32>, vector<8x128xf32> -> vector<8x256xf32>
    %234 = arith.truncf %233 : vector<8x256xf32> to vector<8x256xbf16>
    %235 = vector.extract_strided_slice %35 {offsets = [40, 0], sizes = [8, 512], strides = [1, 1]} : vector<64x512xf32> to vector<8x512xf32>
    %236 = arith.addf %235, %56 : vector<8x512xf32>
    %cst_41 = arith.constant dense<0.000000e+00> : vector<8x512xf32>
    %237 = tpu.matmul %234, %57, %cst_41 {dimension_numbers = #tpu.dot_dimension_numbers<[1], [0], [0], [1], [0, 0, 1, 1], [], []>} : vector<8x256xbf16>, vector<256x512xbf16>, vector<8x512xf32> -> vector<8x512xf32>
    %238 = arith.addf %236, %237 : vector<8x512xf32>
    %239 = vector.extract_strided_slice %238 {offsets = [0, 0], sizes = [8, 128], strides = [1, 1]} : vector<8x512xf32> to vector<8x128xf32>
    %240 = arith.negf %239 : vector<8x128xf32>
    %241 = math.exp %240 : vector<8x128xf32>
    %cst_42 = arith.constant 1.000000e+00 : f32
    %242 = vector.broadcast %cst_42 : f32 to vector<8x128xf32>
    %243 = arith.addf %242, %241 : vector<8x128xf32>
    %244 = arith.divf %242, %243 : vector<8x128xf32>
    %245 = vector.extract_strided_slice %238 {offsets = [0, 128], sizes = [8, 128], strides = [1, 1]} : vector<8x512xf32> to vector<8x128xf32>
    %246 = arith.negf %245 : vector<8x128xf32>
    %247 = math.exp %246 : vector<8x128xf32>
    %cst_43 = arith.constant 1.000000e+00 : f32
    %248 = vector.broadcast %cst_43 : f32 to vector<8x128xf32>
    %249 = arith.addf %248, %247 : vector<8x128xf32>
    %250 = arith.divf %248, %249 : vector<8x128xf32>
    %251 = vector.extract_strided_slice %238 {offsets = [0, 256], sizes = [8, 128], strides = [1, 1]} : vector<8x512xf32> to vector<8x128xf32>
    %252 = math.tanh %251 : vector<8x128xf32>
    %253 = vector.extract_strided_slice %238 {offsets = [0, 384], sizes = [8, 128], strides = [1, 1]} : vector<8x512xf32> to vector<8x128xf32>
    %254 = arith.negf %253 : vector<8x128xf32>
    %255 = math.exp %254 : vector<8x128xf32>
    %cst_44 = arith.constant 1.000000e+00 : f32
    %256 = vector.broadcast %cst_44 : f32 to vector<8x128xf32>
    %257 = arith.addf %256, %255 : vector<8x128xf32>
    %258 = arith.divf %256, %257 : vector<8x128xf32>
    %259 = arith.mulf %250, %226 : vector<8x128xf32>
    %260 = arith.mulf %244, %252 : vector<8x128xf32>
    %261 = arith.addf %259, %260 : vector<8x128xf32>
    %262 = math.tanh %261 : vector<8x128xf32>
    %263 = arith.mulf %258, %262 : vector<8x128xf32>
    %264 = vector.broadcast %40 : vector<8x1xf32> to vector<8x128xf32>
    %265 = arith.mulf %263, %264 : vector<8x128xf32>
    %266 = vector.broadcast %47 : vector<8x1xf32> to vector<8x128xf32>
    %267 = arith.mulf %263, %266 : vector<8x128xf32>
    %268 = tpu.concatenate %265, %267 in 1 : vector<8x128xf32>, vector<8x128xf32> -> vector<8x256xf32>
    %269 = arith.truncf %268 : vector<8x256xf32> to vector<8x256xbf16>
    %270 = vector.extract_strided_slice %35 {offsets = [48, 0], sizes = [8, 512], strides = [1, 1]} : vector<64x512xf32> to vector<8x512xf32>
    %271 = arith.addf %270, %56 : vector<8x512xf32>
    %cst_45 = arith.constant dense<0.000000e+00> : vector<8x512xf32>
    %272 = tpu.matmul %269, %57, %cst_45 {dimension_numbers = #tpu.dot_dimension_numbers<[1], [0], [0], [1], [0, 0, 1, 1], [], []>} : vector<8x256xbf16>, vector<256x512xbf16>, vector<8x512xf32> -> vector<8x512xf32>
    %273 = arith.addf %271, %272 : vector<8x512xf32>
    %274 = vector.extract_strided_slice %273 {offsets = [0, 0], sizes = [8, 128], strides = [1, 1]} : vector<8x512xf32> to vector<8x128xf32>
    %275 = arith.negf %274 : vector<8x128xf32>
    %276 = math.exp %275 : vector<8x128xf32>
    %cst_46 = arith.constant 1.000000e+00 : f32
    %277 = vector.broadcast %cst_46 : f32 to vector<8x128xf32>
    %278 = arith.addf %277, %276 : vector<8x128xf32>
    %279 = arith.divf %277, %278 : vector<8x128xf32>
    %280 = vector.extract_strided_slice %273 {offsets = [0, 128], sizes = [8, 128], strides = [1, 1]} : vector<8x512xf32> to vector<8x128xf32>
    %281 = arith.negf %280 : vector<8x128xf32>
    %282 = math.exp %281 : vector<8x128xf32>
    %cst_47 = arith.constant 1.000000e+00 : f32
    %283 = vector.broadcast %cst_47 : f32 to vector<8x128xf32>
    %284 = arith.addf %283, %282 : vector<8x128xf32>
    %285 = arith.divf %283, %284 : vector<8x128xf32>
    %286 = vector.extract_strided_slice %273 {offsets = [0, 256], sizes = [8, 128], strides = [1, 1]} : vector<8x512xf32> to vector<8x128xf32>
    %287 = math.tanh %286 : vector<8x128xf32>
    %288 = vector.extract_strided_slice %273 {offsets = [0, 384], sizes = [8, 128], strides = [1, 1]} : vector<8x512xf32> to vector<8x128xf32>
    %289 = arith.negf %288 : vector<8x128xf32>
    %290 = math.exp %289 : vector<8x128xf32>
    %cst_48 = arith.constant 1.000000e+00 : f32
    %291 = vector.broadcast %cst_48 : f32 to vector<8x128xf32>
    %292 = arith.addf %291, %290 : vector<8x128xf32>
    %293 = arith.divf %291, %292 : vector<8x128xf32>
    %294 = arith.mulf %285, %261 : vector<8x128xf32>
    %295 = arith.mulf %279, %287 : vector<8x128xf32>
    %296 = arith.addf %294, %295 : vector<8x128xf32>
    %297 = math.tanh %296 : vector<8x128xf32>
    %298 = arith.mulf %293, %297 : vector<8x128xf32>
    %299 = vector.broadcast %40 : vector<8x1xf32> to vector<8x128xf32>
    %300 = arith.mulf %298, %299 : vector<8x128xf32>
    %301 = vector.broadcast %47 : vector<8x1xf32> to vector<8x128xf32>
    %302 = arith.mulf %298, %301 : vector<8x128xf32>
    %303 = tpu.concatenate %300, %302 in 1 : vector<8x128xf32>, vector<8x128xf32> -> vector<8x256xf32>
    %304 = arith.truncf %303 : vector<8x256xf32> to vector<8x256xbf16>
    %305 = vector.extract_strided_slice %35 {offsets = [56, 0], sizes = [8, 512], strides = [1, 1]} : vector<64x512xf32> to vector<8x512xf32>
    %306 = arith.addf %305, %56 : vector<8x512xf32>
    %cst_49 = arith.constant dense<0.000000e+00> : vector<8x512xf32>
    %307 = tpu.matmul %304, %57, %cst_49 {dimension_numbers = #tpu.dot_dimension_numbers<[1], [0], [0], [1], [0, 0, 1, 1], [], []>} : vector<8x256xbf16>, vector<256x512xbf16>, vector<8x512xf32> -> vector<8x512xf32>
    %308 = arith.addf %306, %307 : vector<8x512xf32>
    %309 = vector.extract_strided_slice %308 {offsets = [0, 0], sizes = [8, 128], strides = [1, 1]} : vector<8x512xf32> to vector<8x128xf32>
    %310 = arith.negf %309 : vector<8x128xf32>
    %311 = math.exp %310 : vector<8x128xf32>
    %cst_50 = arith.constant 1.000000e+00 : f32
    %312 = vector.broadcast %cst_50 : f32 to vector<8x128xf32>
    %313 = arith.addf %312, %311 : vector<8x128xf32>
    %314 = arith.divf %312, %313 : vector<8x128xf32>
    %315 = vector.extract_strided_slice %308 {offsets = [0, 128], sizes = [8, 128], strides = [1, 1]} : vector<8x512xf32> to vector<8x128xf32>
    %316 = arith.negf %315 : vector<8x128xf32>
    %317 = math.exp %316 : vector<8x128xf32>
    %cst_51 = arith.constant 1.000000e+00 : f32
    %318 = vector.broadcast %cst_51 : f32 to vector<8x128xf32>
    %319 = arith.addf %318, %317 : vector<8x128xf32>
    %320 = arith.divf %318, %319 : vector<8x128xf32>
    %321 = vector.extract_strided_slice %308 {offsets = [0, 256], sizes = [8, 128], strides = [1, 1]} : vector<8x512xf32> to vector<8x128xf32>
    %322 = math.tanh %321 : vector<8x128xf32>
    %323 = vector.extract_strided_slice %308 {offsets = [0, 384], sizes = [8, 128], strides = [1, 1]} : vector<8x512xf32> to vector<8x128xf32>
    %324 = arith.negf %323 : vector<8x128xf32>
    %325 = math.exp %324 : vector<8x128xf32>
    %cst_52 = arith.constant 1.000000e+00 : f32
    %326 = vector.broadcast %cst_52 : f32 to vector<8x128xf32>
    %327 = arith.addf %326, %325 : vector<8x128xf32>
    %328 = arith.divf %326, %327 : vector<8x128xf32>
    %329 = arith.mulf %320, %296 : vector<8x128xf32>
    %330 = arith.mulf %314, %322 : vector<8x128xf32>
    %331 = arith.addf %329, %330 : vector<8x128xf32>
    %332 = math.tanh %331 : vector<8x128xf32>
    %333 = arith.mulf %328, %332 : vector<8x128xf32>
    %334 = vector.extract_strided_slice %88 {offsets = [0, 0], sizes = [2, 128], strides = [1, 1]} : vector<8x128xf32> to vector<2x128xf32>
    %335 = vector.extract_strided_slice %333 {offsets = [2, 0], sizes = [2, 128], strides = [1, 1]} : vector<8x128xf32> to vector<2x128xf32>
    %336 = tpu.concatenate %334, %335 in 1 : vector<2x128xf32>, vector<2x128xf32> -> vector<2x256xf32>
    %337 = vector.extract_strided_slice %123 {offsets = [0, 0], sizes = [2, 128], strides = [1, 1]} : vector<8x128xf32> to vector<2x128xf32>
    %338 = vector.extract_strided_slice %298 {offsets = [2, 0], sizes = [2, 128], strides = [1, 1]} : vector<8x128xf32> to vector<2x128xf32>
    %339 = tpu.concatenate %337, %338 in 1 : vector<2x128xf32>, vector<2x128xf32> -> vector<2x256xf32>
    %340 = vector.extract_strided_slice %158 {offsets = [0, 0], sizes = [2, 128], strides = [1, 1]} : vector<8x128xf32> to vector<2x128xf32>
    %341 = vector.extract_strided_slice %263 {offsets = [2, 0], sizes = [2, 128], strides = [1, 1]} : vector<8x128xf32> to vector<2x128xf32>
    %342 = tpu.concatenate %340, %341 in 1 : vector<2x128xf32>, vector<2x128xf32> -> vector<2x256xf32>
    %343 = vector.extract_strided_slice %193 {offsets = [0, 0], sizes = [2, 128], strides = [1, 1]} : vector<8x128xf32> to vector<2x128xf32>
    %344 = vector.extract_strided_slice %228 {offsets = [2, 0], sizes = [2, 128], strides = [1, 1]} : vector<8x128xf32> to vector<2x128xf32>
    %345 = tpu.concatenate %343, %344 in 1 : vector<2x128xf32>, vector<2x128xf32> -> vector<2x256xf32>
    %346 = vector.extract_strided_slice %228 {offsets = [0, 0], sizes = [2, 128], strides = [1, 1]} : vector<8x128xf32> to vector<2x128xf32>
    %347 = vector.extract_strided_slice %193 {offsets = [2, 0], sizes = [2, 128], strides = [1, 1]} : vector<8x128xf32> to vector<2x128xf32>
    %348 = tpu.concatenate %346, %347 in 1 : vector<2x128xf32>, vector<2x128xf32> -> vector<2x256xf32>
    %349 = vector.extract_strided_slice %263 {offsets = [0, 0], sizes = [2, 128], strides = [1, 1]} : vector<8x128xf32> to vector<2x128xf32>
    %350 = vector.extract_strided_slice %158 {offsets = [2, 0], sizes = [2, 128], strides = [1, 1]} : vector<8x128xf32> to vector<2x128xf32>
    %351 = tpu.concatenate %349, %350 in 1 : vector<2x128xf32>, vector<2x128xf32> -> vector<2x256xf32>
    %352 = vector.extract_strided_slice %298 {offsets = [0, 0], sizes = [2, 128], strides = [1, 1]} : vector<8x128xf32> to vector<2x128xf32>
    %353 = vector.extract_strided_slice %123 {offsets = [2, 0], sizes = [2, 128], strides = [1, 1]} : vector<8x128xf32> to vector<2x128xf32>
    %354 = tpu.concatenate %352, %353 in 1 : vector<2x128xf32>, vector<2x128xf32> -> vector<2x256xf32>
    %355 = vector.extract_strided_slice %333 {offsets = [0, 0], sizes = [2, 128], strides = [1, 1]} : vector<8x128xf32> to vector<2x128xf32>
    %356 = vector.extract_strided_slice %88 {offsets = [2, 0], sizes = [2, 128], strides = [1, 1]} : vector<8x128xf32> to vector<2x128xf32>
    %357 = tpu.concatenate %355, %356 in 1 : vector<2x128xf32>, vector<2x128xf32> -> vector<2x256xf32>
    %358 = tpu.concatenate %336, %339, %342, %345, %348, %351, %354, %357 in 0 : vector<2x256xf32>, vector<2x256xf32>, vector<2x256xf32>, vector<2x256xf32>, vector<2x256xf32>, vector<2x256xf32>, vector<2x256xf32>, vector<2x256xf32> -> vector<16x256xf32>
    %c0_53 = arith.constant 0 : index
    %c0_54 = arith.constant 0 : index
    %359 = vector.load %arg5[%c0_53, %c0_54] : memref<264x128xf32, #tpu.memory_space<vmem>>, vector<256x128xf32>
    %cst_55 = arith.constant dense<0.000000e+00> : vector<16x128xf32>
    %360 = tpu.matmul %358, %359, %cst_55 {dimension_numbers = #tpu.dot_dimension_numbers<[1], [0], [0], [1], [0, 0, 1, 1], [], []>} : vector<16x256xf32>, vector<256x128xf32>, vector<16x128xf32> -> vector<16x128xf32>
    %c256 = arith.constant 256 : index
    %c0_56 = arith.constant 0 : index
    %361 = vector.load %arg5[%c256, %c0_56] : memref<264x128xf32, #tpu.memory_space<vmem>>, vector<1x128xf32>
    %362 = vector.broadcast %361 : vector<1x128xf32> to vector<16x128xf32>
    %363 = arith.addf %360, %362 : vector<16x128xf32>
    %364 = arith.negf %363 : vector<16x128xf32>
    %365 = math.exp %364 : vector<16x128xf32>
    %cst_57 = arith.constant 1.000000e+00 : f32
    %366 = vector.broadcast %cst_57 : f32 to vector<16x128xf32>
    %367 = arith.addf %366, %365 : vector<16x128xf32>
    %368 = arith.divf %366, %367 : vector<16x128xf32>
    %c0_58 = arith.constant 0 : index
    %c0_59 = arith.constant 0 : index
    %369 = vector.load %arg6[%c0_58, %c0_59] : memref<16x128xf32, #tpu.memory_space<vmem>>, vector<16x128xf32>
    tpu.vector_store %arg6[%c0_58, %c0_59], %368 {strides = array<i32>} : memref<16x128xf32, #tpu.memory_space<vmem>>, vector<16x128xf32>,
    return
  }
}

</mosaic_0001>

<llo_original>
// kernel: named_entity_forward.1
$region0: #{named_entity_forward.1}
  #allocation0 [shape = 'u32[]', space=smem, size = 0x4, offset = 0x4, fixed_abs, tag = 'smem constant byte address 0x4 - core index']
  #allocation1 [shape = 'u32[144,128]{1,0:T(1,128)}', space=vmem, size = 0x12000, scoped, tag = 'internal scratch']
  %s0 = inlined_call_operand.vmem [shape: s32[64,1], index: 0, kind: input, shape index: {}]
  %s1 = inlined_call_operand.vmem [shape: f32[50,32], index: 1, kind: input, shape index: {}]
  %s2 = inlined_call_operand.vmem [shape: f32[40,32], index: 2, kind: input, shape index: {}]
  %s3 = inlined_call_operand.hbm [shape: f32[80,512], index: 3, kind: input, shape index: {}]
  %s4 = inlined_call_operand.hbm [shape: bf16[256,512], index: 4, kind: input, shape index: {}]
  %s5 = inlined_call_operand.vmem [shape: f32[264,128], index: 5, kind: input, shape index: {}]
  %s6 = inlined_call_operand.vmem [shape: f32[16,128], index: 6, kind: output, shape index: {}]
  %s7 = sld [smem:[#allocation0]]
  $region42: #{named_entity_forward.1} parent=0
    _
  %s9 = ssub.s32 1, %s7
  %s10 = scalar_select 0, %s9, %s7
  $region1: #{named_entity_forward.1} parent=0
    #allocation2 [shape = 'u8[163840]{0}', space=vmem, size = 0x28000, scoped, tag = 'input window, operand 3, single buffered']
    #allocation3 [shape = 's32[1]{0}', space=sflag, size = 0x4, scoped, tag = 'scoped memory for named_entity_forward.1']
    #allocation4 [shape = 'u8[262144]{0}', space=vmem, size = 0x40000, scoped, tag = 'input window, operand 4, single buffered']
    #allocation5 [shape = 's32[1]{0}', space=sflag, size = 0x4, scoped, tag = 'scoped memory for named_entity_forward.1']
    %11 = vsyncpa [#allocation3], 0
    %12 = vsyncpa [#allocation5], 0
    // Predicated region
    $region2: #{named_entity_forward.1} parent=1 // pred_check
      _
    $region3: #{named_entity_forward.1} parent=1 // pred_check_branch
      %14 = sbr.rel (0) target = $region5
    $region4: #{named_entity_forward.1} parent=1 // pred_region
      _
    $region5: #{named_entity_forward.1} parent=1 // pred_fallthru
      _
    // Predicated region
    $region6: #{named_entity_forward.1} parent=1 // pred_check
      _
    $region7: #{named_entity_forward.1} parent=1 // pred_check_branch
      %16 = sbr.rel (0) target = $region9
    $region8: #{named_entity_forward.1} parent=1 // pred_region
      _
    $region9: #{named_entity_forward.1} parent=1 // pred_fallthru
      _
    // Predicated region
    $region10: #{named_entity_forward.1} parent=1 // pred_check
      _
    $region11: #{named_entity_forward.1} parent=1 // pred_check_branch
      %18 = sbr.rel (0) target = $region13
    $region12: #{named_entity_forward.1} parent=1 // pred_region
      _
    $region13: #{named_entity_forward.1} parent=1 // pred_fallthru
      _
    // Predicated region
    $region14: #{named_entity_forward.1} parent=1 // pred_check
      _
    $region15: #{named_entity_forward.1} parent=1 // pred_check_branch
      %20 = sbr.rel (0) target = $region17
    $region16: #{named_entity_forward.1} parent=1 // pred_region
      %s22 = ssub.s32 5120, 5120
      %23 = vsyncadd [#allocation3], %s22
      %s24 = sshll.u32 [#allocation2], 4
      %s25 = int_to_ptr.vmem [resolvable:$true] %s24
      %30 = dma.hbm_to_vmem [thread:$0]  %s3, 5120, %s25, [#allocation3], 512, 512, 32
    $region17: #{named_entity_forward.1} parent=1 // pred_fallthru
      _
    // Predicated region
    $region18: #{named_entity_forward.1} parent=1 // pred_check
      _
    $region19: #{named_entity_forward.1} parent=1 // pred_check_branch
      %32 = sbr.rel (0) target = $region21
    $region20: #{named_entity_forward.1} parent=1 // pred_region
      %s34 = ssub.s32 8192, 8192
      %35 = vsyncadd [#allocation5], %s34
      %s36 = sshll.u32 [#allocation4], 4
      %s37 = int_to_ptr.vmem [resolvable:$true] %s36
      %42 = dma.hbm_to_vmem [thread:$0]  %s4, 8192, %s37, [#allocation5], 256, 256, 16
    $region21: #{named_entity_forward.1} parent=1 // pred_fallthru
      _
    // Predicated region
    $region22: #{named_entity_forward.1} parent=1 // pred_check
      _
    $region23: #{named_entity_forward.1} parent=1 // pred_check_branch
      %44 = sbr.rel (0) target = $region25
    $region24: #{named_entity_forward.1} parent=1 // pred_region
      _
    $region25: #{named_entity_forward.1} parent=1 // pred_fallthru
      _
    // Predicated region
    $region26: #{named_entity_forward.1} parent=1 // pred_check
      _
    $region27: #{named_entity_forward.1} parent=1 // pred_check_branch
      %46 = sbr.rel (0) target = $region29
    $region28: #{named_entity_forward.1} parent=1 // pred_region
      %47 = dma.done [#allocation3], 5120
    $region29: #{named_entity_forward.1} parent=1 // pred_fallthru
      _
    // Predicated region
    $region30: #{named_entity_forward.1} parent=1 // pred_check
      _
    $region31: #{named_entity_forward.1} parent=1 // pred_check_branch
      %49 = sbr.rel (0) target = $region33
    $region32: #{named_entity_forward.1} parent=1 // pred_region
      %50 = dma.done [#allocation5], 8192
    $region33: #{named_entity_forward.1} parent=1 // pred_fallthru
      _
    %v52 = vlaneseq
    %v53 = vshrl.u32 %v52, 7
    %v54 = vadd.s32 %v53, 8
    %v55 = vadd.s32 %v53, 16
    %v56 = vadd.s32 %v53, 24
    %v57 = vadd.s32 %v53, 32
    %v58 = vadd.s32 %v53, 40
    %v59 = vadd.s32 %v53, 48
    %v60 = vadd.s32 %v53, 56
    %v61 = vand.u32 %v53, 7
    %v62 = vand.u32 %v54, 7
    %v63 = vand.u32 %v55, 7
    %v64 = vand.u32 %v56, 7
    %v65 = vand.u32 %v57, 7
    %v66 = vand.u32 %v58, 7
    %v67 = vand.u32 %v59, 7
    %v68 = vand.u32 %v60, 7
    %vm69 = vcmp.lt.s32.totalorder %v61, 2
    %vm70 = vcmp.lt.s32.totalorder %v62, 2
    %vm71 = vcmp.lt.s32.totalorder %v63, 2
    %vm72 = vcmp.lt.s32.totalorder %v64, 2
    %vm73 = vcmp.lt.s32.totalorder %v65, 2
    %vm74 = vcmp.lt.s32.totalorder %v66, 2
    %vm75 = vcmp.lt.s32.totalorder %v67, 2
    %vm76 = vcmp.lt.s32.totalorder %v68, 2
    %v77 = vsel %vm69, 1, 0
    %v78 = vsel %vm70, 1, 0
    %v79 = vsel %vm71, 1, 0
    %v80 = vsel %vm72, 1, 0
    %v81 = vsel %vm73, 1, 0
    %v82 = vsel %vm74, 1, 0
    %v83 = vsel %vm75, 1, 0
    %v84 = vsel %vm76, 1, 0
    %v85 = vcvt.s32.f32 %v77
    %v86 = vcvt.s32.f32 %v78
    %v87 = vcvt.s32.f32 %v79
    %v88 = vcvt.s32.f32 %v80
    %v89 = vcvt.s32.f32 %v81
    %v90 = vcvt.s32.f32 %v82
    %v91 = vcvt.s32.f32 %v83
    %v92 = vcvt.s32.f32 %v84
    %vm93 = vcmp.ge.s32.totalorder %v61, 2
    %vm94 = vcmp.ge.s32.totalorder %v62, 2
    %vm95 = vcmp.ge.s32.totalorder %v63, 2
    %vm96 = vcmp.ge.s32.totalorder %v64, 2
    %vm97 = vcmp.ge.s32.totalorder %v65, 2
    %vm98 = vcmp.ge.s32.totalorder %v66, 2
    %vm99 = vcmp.ge.s32.totalorder %v67, 2
    %vm100 = vcmp.ge.s32.totalorder %v68, 2
    %vm101 = vcmp.lt.s32.totalorder %v61, 4
    %vm102 = vcmp.lt.s32.totalorder %v62, 4
    %vm103 = vcmp.lt.s32.totalorder %v63, 4
    %vm104 = vcmp.lt.s32.totalorder %v64, 4
    %vm105 = vcmp.lt.s32.totalorder %v65, 4
    %vm106 = vcmp.lt.s32.totalorder %v66, 4
    %vm107 = vcmp.lt.s32.totalorder %v67, 4
    %vm108 = vcmp.lt.s32.totalorder %v68, 4
    %vm109 = vmand %vm93, %vm101
    %vm110 = vmand %vm94, %vm102
    %vm111 = vmand %vm95, %vm103
    %vm112 = vmand %vm96, %vm104
    %vm113 = vmand %vm97, %vm105
    %vm114 = vmand %vm98, %vm106
    %vm115 = vmand %vm99, %vm107
    %vm116 = vmand %vm100, %vm108
    %v117 = vsel %vm109, 1, 0
    %v118 = vsel %vm110, 1, 0
    %v119 = vsel %vm111, 1, 0
    %v120 = vsel %vm112, 1, 0
    %v121 = vsel %vm113, 1, 0
    %v122 = vsel %vm114, 1, 0
    %v123 = vsel %vm115, 1, 0
    %v124 = vsel %vm116, 1, 0
    %v125 = vcvt.s32.f32 %v117
    %v126 = vcvt.s32.f32 %v118
    %v127 = vcvt.s32.f32 %v119
    %v128 = vcvt.s32.f32 %v120
    %v129 = vcvt.s32.f32 %v121
    %v130 = vcvt.s32.f32 %v122
    %v131 = vcvt.s32.f32 %v123
    %v132 = vcvt.s32.f32 %v124
    %v133 = vld [vmem:[%s0] sm:$0xff]
    %v134 = vld [vmem:[%s0 + $0x8] sm:$0xff]
    %v135 = vld [vmem:[%s0 + $0x10] sm:$0xff]
    %v136 = vld [vmem:[%s0 + $0x18] sm:$0xff]
    %v137 = vld [vmem:[%s0 + $0x20] sm:$0xff]
    %v138 = vld [vmem:[%s0 + $0x28] sm:$0xff]
    %v139 = vld [vmem:[%s0 + $0x30] sm:$0xff]
    %v140 = vld [vmem:[%s0 + $0x38] sm:$0xff]
    %v141 = vlaneseq
    %v142 = vand.u32 %v141, 127
    %143 = vset.pattern.permute.xlu0 0
    %144 = vperm.xlu0 %143, %v133
    %v145 = vpop.permute.xlu0 %144
    %146 = vset.pattern.permute.xlu0 0
    %147 = vperm.xlu0 %146, %v134
    %v148 = vpop.permute.xlu0 %147
    %149 = vset.pattern.permute.xlu0 0
    %150 = vperm.xlu0 %149, %v135
    %v151 = vpop.permute.xlu0 %150
    %152 = vset.pattern.permute.xlu0 0
    %153 = vperm.xlu0 %152, %v136
    %v154 = vpop.permute.xlu0 %153
    %155 = vset.pattern.permute.xlu0 0
    %156 = vperm.xlu0 %155, %v137
    %v157 = vpop.permute.xlu0 %156
    %158 = vset.pattern.permute.xlu0 0
    %159 = vperm.xlu0 %158, %v138
    %v160 = vpop.permute.xlu0 %159
    %161 = vset.pattern.permute.xlu0 0
    %162 = vperm.xlu0 %161, %v139
    %v163 = vpop.permute.xlu0 %162
    %164 = vset.pattern.permute.xlu0 0
    %165 = vperm.xlu0 %164, %v140
    %v166 = vpop.permute.xlu0 %165
    %vm167 = vcmp.eq.s32.totalorder %v142, %v145
    %vm168 = vcmp.eq.s32.totalorder %v142, %v148
    %vm169 = vcmp.eq.s32.totalorder %v142, %v151
    %vm170 = vcmp.eq.s32.totalorder %v142, %v154
    %vm171 = vcmp.eq.s32.totalorder %v142, %v157
    %vm172 = vcmp.eq.s32.totalorder %v142, %v160
    %vm173 = vcmp.eq.s32.totalorder %v142, %v163
    %vm174 = vcmp.eq.s32.totalorder %v142, %v166
    %v175 = vsel %vm167, 1, 0
    %v176 = vsel %vm168, 1, 0
    %v177 = vsel %vm169, 1, 0
    %v178 = vsel %vm170, 1, 0
    %v179 = vsel %vm171, 1, 0
    %v180 = vsel %vm172, 1, 0
    %v181 = vsel %vm173, 1, 0
    %v182 = vsel %vm174, 1, 0
    %v183 = vcvt.s32.f32 %v175
    %v184 = vcvt.s32.f32 %v176
    %v185 = vcvt.s32.f32 %v177
    %v186 = vcvt.s32.f32 %v178
    %v187 = vcvt.s32.f32 %v179
    %v188 = vcvt.s32.f32 %v180
    %v189 = vcvt.s32.f32 %v181
    %v190 = vcvt.s32.f32 %v182
    %v191 = vld [vmem:[%s1] sm:$0xff]
    %v192 = vld [vmem:[%s1 + $0x8] sm:$0xff]
    %v193 = vld [vmem:[%s1 + $0x10] sm:$0xff]
    %v194 = vld [vmem:[%s1 + $0x18] sm:$0xff]
    %v195 = vld [vmem:[%s1 + $0x20] sm:$0xff]
    %v196 = vld [vmem:[%s1 + $0x28] sm:$0xff]
    %v197 = vld [vmem:[%s1 + $0x30] sm:$0x3]
    %vm198 = vcmask 408576
    %v200 = vsel %vm198, %v183, 0
    %v203 = vsel %vm198, %v184, 0
    %v206 = vsel %vm198, %v185, 0
    %v209 = vsel %vm198, %v186, 0
    %v212 = vsel %vm198, %v187, 0
    %v215 = vsel %vm198, %v188, 0
    %v218 = vsel %vm198, %v189, 0
    %v221 = vsel %vm198, %v190, 0
    %vm223 = vcmask 1041408
    %v225 = vsel %vm223, %v197, 0
    %227 = vmatprep.subr.mxu0 0.0
    %228 = vmatpush1.msra.mxu0 %v191
    %229 = vmatprep.subr.mxu0 0.0
    %230 = vmatpush1.msra.mxu0 %v192
    %231 = vmatprep.subr.mxu0 0.0
    %232 = vmatpush1.msra.mxu0 %v193
    %233 = vmatprep.subr.mxu0 0.0
    %234 = vmatpush1.msra.mxu0 %v194
    %235 = vmatprep.subr.mxu0 0.0
    %236 = vmatpush1.msra.mxu0 %v195
    %237 = vmatprep.subr.mxu0 0.0
    %238 = vmatpush1.msra.mxu0 %v196
    %239 = vmatprep.subr.mxu0 0.0
    %240 = vmatpush1.msra.mxu0 %v225
    %241 = vmatprep.subr.mxu0 0.0
    %242 = vmatpush1.msra.mxu0 0.0
    %243 = vmatprep.subr.mxu0 0.0
    %244 = vmatpush1.msra.mxu0 0.0
    %245 = vmatprep.subr.mxu0 0.0
    %246 = vmatpush1.msra.mxu0 0.0
    %247 = vmatprep.subr.mxu0 0.0
    %248 = vmatpush1.msra.mxu0 0.0
    %249 = vmatprep.subr.mxu0 0.0
    %250 = vmatpush1.msra.mxu0 0.0
    %251 = vmatprep.subr.mxu0 0.0
    %252 = vmatpush1.msra.mxu0 0.0
    %253 = vmatprep.subr.mxu0 0.0
    %254 = vmatpush1.msra.mxu0 0.0
    %255 = vmatprep.subr.mxu0 0.0
    %256 = vmatpush1.msra.mxu0 0.0
    %257 = vmatprep.subr.mxu0 0.0
    %258 = vmatpush1.msra.mxu0 0.0
    %259 = vmatprep.subr.mxu0 0.0
    %260 = vmatpush1.msra.mxu0 0.0
    %261 = vmatprep.subr.mxu0 0.0
    %262 = vmatpush1.msra.mxu0 0.0
    %263 = vmatprep.subr.mxu0 0.0
    %264 = vmatpush1.msra.mxu0 0.0
    %265 = vmatprep.subr.mxu0 0.0
    %266 = vmatpush1.msra.mxu0 0.0
    %267 = vmatprep.subr.mxu0 0.0
    %268 = vmatpush1.msra.mxu0 0.0
    %269 = vmatprep.subr.mxu0 0.0
    %270 = vmatpush1.msra.mxu0 0.0
    %271 = vmatprep.subr.mxu0 0.0
    %272 = vmatpush1.msra.mxu0 0.0
    %273 = vmatprep.subr.mxu0 0.0
    %274 = vmatpush1.msra.mxu0 0.0
    %275 = vmatprep.subr.mxu0 0.0
    %276 = vmatpush1.msra.mxu0 0.0
    %277 = vmatprep.subr.mxu0 0.0
    %278 = vmatpush1.msra.mxu0 0.0
    %279 = vmatprep.subr.mxu0 0.0
    %280 = vmatpush1.msra.mxu0 0.0
    %281 = vmatprep.subr.mxu0 0.0
    %282 = vmatpush1.msra.mxu0 0.0
    %283 = vmatprep.subr.mxu0 0.0
    %284 = vmatpush1.msra.mxu0 0.0
    %285 = vmatprep.subr.mxu0 0.0
    %286 = vmatpush1.msra.mxu0 0.0
    %287 = vmatprep.subr.mxu0 0.0
    %288 = vmatpush1.msra.mxu0 0.0
    %289 = vmatprep.subr.mxu0 0.0
    %290 = vmatpush1.msra.mxu0 0.0
    %291 = vmatprep.mubr.f32.mxu0 0.0
    %292 = vmatmul.mubr.f32.gmra.mrb[0].mxu0 %v200
    %v293 = vpop.f32.mrb[0].mxu0
    %v294 = vadd.f32 0.0, %v293
    %v295 = vpop.f32.mrb[0].mxu0
    %296 = vmatprep.mubr.f32.mxu0 0.0
    %297 = vmatmul.mubr.f32.gmra.mrb[0].mxu0 %v203
    %v298 = vpop.f32.mrb[0].mxu0
    %v299 = vadd.f32 0.0, %v298
    %v300 = vpop.f32.mrb[0].mxu0
    %301 = vmatprep.mubr.f32.mxu0 0.0
    %302 = vmatmul.mubr.f32.gmra.mrb[0].mxu0 %v206
    %v303 = vpop.f32.mrb[0].mxu0
    %v304 = vadd.f32 0.0, %v303
    %v305 = vpop.f32.mrb[0].mxu0
    %306 = vmatprep.mubr.f32.mxu0 0.0
    %307 = vmatmul.mubr.f32.gmra.mrb[0].mxu0 %v209
    %v308 = vpop.f32.mrb[0].mxu0
    %v309 = vadd.f32 0.0, %v308
    %v310 = vpop.f32.mrb[0].mxu0
    %311 = vmatprep.mubr.f32.mxu0 0.0
    %312 = vmatmul.mubr.f32.gmra.mrb[0].mxu0 %v212
    %v313 = vpop.f32.mrb[0].mxu0
    %v314 = vadd.f32 0.0, %v313
    %v315 = vpop.f32.mrb[0].mxu0
    %316 = vmatprep.mubr.f32.mxu0 0.0
    %317 = vmatmul.mubr.f32.gmra.mrb[0].mxu0 %v215
    %v318 = vpop.f32.mrb[0].mxu0
    %v319 = vadd.f32 0.0, %v318
    %v320 = vpop.f32.mrb[0].mxu0
    %321 = vmatprep.mubr.f32.mxu0 0.0
    %322 = vmatmul.mubr.f32.gmra.mrb[0].mxu0 %v218
    %v323 = vpop.f32.mrb[0].mxu0
    %v324 = vadd.f32 0.0, %v323
    %v325 = vpop.f32.mrb[0].mxu0
    %326 = vmatprep.mubr.f32.mxu0 0.0
    %327 = vmatmul.mubr.f32.gmra.mrb[0].mxu0 %v221
    %v328 = vpop.f32.mrb[0].mxu0
    %v329 = vadd.f32 0.0, %v328
    %v330 = vpop.f32.mrb[0].mxu0
    %331 = vdwg.mxu0
    %v332 = vld [vmem:[%s2] sm:$0xff]
    %v333 = vld [vmem:[%s2 + $0x8] sm:$0xff]
    %v334 = vld [vmem:[%s2 + $0x10] sm:$0xff]
    %v335 = vld [vmem:[%s2 + $0x18] sm:$0xff]
    %v336 = vld [vmem:[%s2 + $0x20] sm:$0x1]
    %v337 = vlaneseq
    %v338 = vshrl.u32 %v337, 7
    %v339 = vsub.s32 0, %v338
    %v340 = vrot.slane %v336, %v339
    %vm341 = vcmask 261120
    %v343 = vsel %vm341, %v294, 0
    %v346 = vsel %vm341, %v299, 0
    %v349 = vsel %vm341, %v304, 0
    %v352 = vsel %vm341, %v309, 0
    %v355 = vsel %vm341, %v314, 0
    %v358 = vsel %vm341, %v319, 0
    %v361 = vsel %vm341, %v324, 0
    %v364 = vsel %vm341, %v329, 0
    %366 = vmatprep.subr.mxu0 0.0
    %367 = vmatpush1.msra.mxu0 %v332
    %368 = vmatprep.subr.mxu0 0.0
    %369 = vmatpush1.msra.mxu0 %v333
    %370 = vmatprep.subr.mxu0 0.0
    %371 = vmatpush1.msra.mxu0 %v334
    %372 = vmatprep.subr.mxu0 0.0
    %373 = vmatpush1.msra.mxu0 %v335
    %374 = vmatprep.subr.mxu0 0.0
    %375 = vmatpush1.msra.mxu0 0.0
    %376 = vmatprep.subr.mxu0 0.0
    %377 = vmatpush1.msra.mxu0 0.0
    %378 = vmatprep.subr.mxu0 0.0
    %379 = vmatpush1.msra.mxu0 0.0
    %380 = vmatprep.subr.mxu0 0.0
    %381 = vmatpush1.msra.mxu0 0.0
    %382 = vmatprep.subr.mxu0 0.0
    %383 = vmatpush1.msra.mxu0 0.0
    %384 = vmatprep.subr.mxu0 0.0
    %385 = vmatpush1.msra.mxu0 0.0
    %386 = vmatprep.subr.mxu0 0.0
    %387 = vmatpush1.msra.mxu0 0.0
    %388 = vmatprep.subr.mxu0 0.0
    %389 = vmatpush1.msra.mxu0 0.0
    %390 = vmatprep.subr.mxu0 0.0
    %391 = vmatpush1.msra.mxu0 0.0
    %392 = vmatprep.subr.mxu0 0.0
    %393 = vmatpush1.msra.mxu0 0.0
    %394 = vmatprep.subr.mxu0 0.0
    %395 = vmatpush1.msra.mxu0 0.0
    %396 = vmatprep.subr.mxu0 0.0
    %397 = vmatpush1.msra.mxu0 0.0
    %398 = vmatprep.subr.mxu0 0.0
    %399 = vmatpush1.msra.mxu0 0.0
    %400 = vmatprep.subr.mxu0 0.0
    %401 = vmatpush1.msra.mxu0 0.0
    %402 = vmatprep.subr.mxu0 0.0
    %403 = vmatpush1.msra.mxu0 0.0
    %404 = vmatprep.subr.mxu0 0.0
    %405 = vmatpush1.msra.mxu0 0.0
    %406 = vmatprep.subr.mxu0 0.0
    %407 = vmatpush1.msra.mxu0 0.0
    %408 = vmatprep.subr.mxu0 0.0
    %409 = vmatpush1.msra.mxu0 0.0
    %410 = vmatprep.subr.mxu0 0.0
    %411 = vmatpush1.msra.mxu0 0.0
    %412 = vmatprep.subr.mxu0 0.0
    %413 = vmatpush1.msra.mxu0 0.0
    %414 = vmatprep.subr.mxu0 0.0
    %415 = vmatpush1.msra.mxu0 0.0
    %416 = vmatprep.subr.mxu0 0.0
    %417 = vmatpush1.msra.mxu0 0.0
    %418 = vmatprep.subr.mxu0 0.0
    %419 = vmatpush1.msra.mxu0 0.0
    %420 = vmatprep.subr.mxu0 0.0
    %421 = vmatpush1.msra.mxu0 0.0
    %422 = vmatprep.subr.mxu0 0.0
    %423 = vmatpush1.msra.mxu0 0.0
    %424 = vmatprep.subr.mxu0 0.0
    %425 = vmatpush1.msra.mxu0 0.0
    %426 = vmatprep.subr.mxu0 0.0
    %427 = vmatpush1.msra.mxu0 0.0
    %428 = vmatprep.subr.mxu0 0.0
    %429 = vmatpush1.msra.mxu0 0.0
    %430 = vmatprep.mubr.f32.mxu0 0.0
    %431 = vmatmul.mubr.f32.gmra.mrb[0].mxu0 %v343
    %v432 = vpop.f32.mrb[0].mxu0
    %v433 = vadd.f32 %v340, %v432
    %v434 = vpop.f32.mrb[0].mxu0
    %435 = vmatprep.mubr.f32.mxu0 0.0
    %436 = vmatmul.mubr.f32.gmra.mrb[0].mxu0 %v346
    %v437 = vpop.f32.mrb[0].mxu0
    %v438 = vadd.f32 %v340, %v437
    %v439 = vpop.f32.mrb[0].mxu0
    %440 = vmatprep.mubr.f32.mxu0 0.0
    %441 = vmatmul.mubr.f32.gmra.mrb[0].mxu0 %v349
    %v442 = vpop.f32.mrb[0].mxu0
    %v443 = vadd.f32 %v340, %v442
    %v444 = vpop.f32.mrb[0].mxu0
    %445 = vmatprep.mubr.f32.mxu0 0.0
    %446 = vmatmul.mubr.f32.gmra.mrb[0].mxu0 %v352
    %v447 = vpop.f32.mrb[0].mxu0
    %v448 = vadd.f32 %v340, %v447
    %v449 = vpop.f32.mrb[0].mxu0
    %450 = vmatprep.mubr.f32.mxu0 0.0
    %451 = vmatmul.mubr.f32.gmra.mrb[0].mxu0 %v355
    %v452 = vpop.f32.mrb[0].mxu0
    %v453 = vadd.f32 %v340, %v452
    %v454 = vpop.f32.mrb[0].mxu0
    %455 = vmatprep.mubr.f32.mxu0 0.0
    %456 = vmatmul.mubr.f32.gmra.mrb[0].mxu0 %v358
    %v457 = vpop.f32.mrb[0].mxu0
    %v458 = vadd.f32 %v340, %v457
    %v459 = vpop.f32.mrb[0].mxu0
    %460 = vmatprep.mubr.f32.mxu0 0.0
    %461 = vmatmul.mubr.f32.gmra.mrb[0].mxu0 %v361
    %v462 = vpop.f32.mrb[0].mxu0
    %v463 = vadd.f32 %v340, %v462
    %v464 = vpop.f32.mrb[0].mxu0
    %465 = vmatprep.mubr.f32.mxu0 0.0
    %466 = vmatmul.mubr.f32.gmra.mrb[0].mxu0 %v364
    %v467 = vpop.f32.mrb[0].mxu0
    %v468 = vadd.f32 %v340, %v467
    %v469 = vpop.f32.mrb[0].mxu0
    %470 = vdwg.mxu0
    %v471 = vmax.f32 %v433, 0.0
    %v472 = vmax.f32 %v438, 0.0
    %v473 = vmax.f32 %v443, 0.0
    %v474 = vmax.f32 %v448, 0.0
    %v475 = vmax.f32 %v453, 0.0
    %v476 = vmax.f32 %v458, 0.0
    %v477 = vmax.f32 %v463, 0.0
    %v478 = vmax.f32 %v468, 0.0
    %v479 = vmul.f32 %v471, %v85
    %v480 = vmul.f32 %v472, %v86
    %v481 = vmul.f32 %v473, %v87
    %v482 = vmul.f32 %v474, %v88
    %v483 = vmul.f32 %v475, %v89
    %v484 = vmul.f32 %v476, %v90
    %v485 = vmul.f32 %v477, %v91
    %v486 = vmul.f32 %v478, %v92
    %v487 = vmul.f32 %v471, %v125
    %v488 = vmul.f32 %v472, %v126
    %v489 = vmul.f32 %v473, %v127
    %v490 = vmul.f32 %v474, %v128
    %v491 = vmul.f32 %v475, %v129
    %v492 = vmul.f32 %v476, %v130
    %v493 = vmul.f32 %v477, %v131
    %v494 = vmul.f32 %v478, %v132
    %503 = vrot.lane.b32.xlu0 %v487, 32
    %v504 = vpop.permute.xlu0 %503
    %505 = vrot.lane.b32.xlu0 %v488, 32
    %v506 = vpop.permute.xlu0 %505
    %507 = vrot.lane.b32.xlu0 %v489, 32
    %v508 = vpop.permute.xlu0 %507
    %509 = vrot.lane.b32.xlu0 %v490, 32
    %v510 = vpop.permute.xlu0 %509
    %511 = vrot.lane.b32.xlu0 %v491, 32
    %v512 = vpop.permute.xlu0 %511
    %513 = vrot.lane.b32.xlu0 %v492, 32
    %v514 = vpop.permute.xlu0 %513
    %515 = vrot.lane.b32.xlu0 %v493, 32
    %v516 = vpop.permute.xlu0 %515
    %517 = vrot.lane.b32.xlu0 %v494, 32
    %v518 = vpop.permute.xlu0 %517
    %v527 = vsel %vm341, %v479, %v504
    %v528 = vsel %vm341, %v480, %v506
    %v529 = vsel %vm341, %v481, %v508
    %v530 = vsel %vm341, %v482, %v510
    %v531 = vsel %vm341, %v483, %v512
    %v532 = vsel %vm341, %v484, %v514
    %v533 = vsel %vm341, %v485, %v516
    %v534 = vsel %vm341, %v486, %v518
    %v535 = vld [vmem:[#allocation2] sm:$0xff]
    %v536 = vld [vmem:[#allocation2 + $0x8] sm:$0xff]
    %v537 = vld [vmem:[#allocation2 + $0x10] sm:$0xff]
    %v538 = vld [vmem:[#allocation2 + $0x18] sm:$0xff]
    %v539 = vld [vmem:[#allocation2 + $0x20] sm:$0xff]
    %v540 = vld [vmem:[#allocation2 + $0x28] sm:$0xff]
    %v541 = vld [vmem:[#allocation2 + $0x30] sm:$0xff]
    %v542 = vld [vmem:[#allocation2 + $0x38] sm:$0xff]
    %v543 = vld [vmem:[#allocation2 + $0x40] sm:$0xff]
    %v544 = vld [vmem:[#allocation2 + $0x48] sm:$0xff]
    %v545 = vld [vmem:[#allocation2 + $0x50] sm:$0xff]
    %v546 = vld [vmem:[#allocation2 + $0x58] sm:$0xff]
    %v547 = vld [vmem:[#allocation2 + $0x60] sm:$0xff]
    %v548 = vld [vmem:[#allocation2 + $0x68] sm:$0xff]
    %v549 = vld [vmem:[#allocation2 + $0x70] sm:$0xff]
    %v550 = vld [vmem:[#allocation2 + $0x78] sm:$0xff]
    %v551 = vld [vmem:[#allocation2 + $0x80] sm:$0xff]
    %v552 = vld [vmem:[#allocation2 + $0x88] sm:$0xff]
    %v553 = vld [vmem:[#allocation2 + $0x90] sm:$0xff]
    %v554 = vld [vmem:[#allocation2 + $0x98] sm:$0xff]
    %v555 = vld [vmem:[#allocation2 + $0xa0] sm:$0xff]
    %v556 = vld [vmem:[#allocation2 + $0xa8] sm:$0xff]
    %v557 = vld [vmem:[#allocation2 + $0xb0] sm:$0xff]
    %v558 = vld [vmem:[#allocation2 + $0xb8] sm:$0xff]
    %v559 = vld [vmem:[#allocation2 + $0xc0] sm:$0xff]
    %v560 = vld [vmem:[#allocation2 + $0xc8] sm:$0xff]
    %v561 = vld [vmem:[#allocation2 + $0xd0] sm:$0xff]
    %v562 = vld [vmem:[#allocation2 + $0xd8] sm:$0xff]
    %v563 = vld [vmem:[#allocation2 + $0xe0] sm:$0xff]
    %v564 = vld [vmem:[#allocation2 + $0xe8] sm:$0xff]
    %v565 = vld [vmem:[#allocation2 + $0xf0] sm:$0xff]
    %v566 = vld [vmem:[#allocation2 + $0xf8] sm:$0xff]
    %vm567 = vcmask 523264
    %v569 = vsel %vm567, %v527, 0
    %v572 = vsel %vm567, %v528, 0
    %v575 = vsel %vm567, %v529, 0
    %v578 = vsel %vm567, %v530, 0
    %v581 = vsel %vm567, %v531, 0
    %v584 = vsel %vm567, %v532, 0
    %v587 = vsel %vm567, %v533, 0
    %v590 = vsel %vm567, %v534, 0
    %592 = vmatprep.subr.mxu0 %v536
    %593 = vmatpush1.msra.mxu0 %v535
    %594 = vmatprep.subr.mxu0 %v540
    %595 = vmatpush1.msra.mxu0 %v539
    %596 = vmatprep.subr.mxu0 %v544
    %597 = vmatpush1.msra.mxu0 %v543
    %598 = vmatprep.subr.mxu0 %v548
    %599 = vmatpush1.msra.mxu0 %v547
    %600 = vmatprep.subr.mxu0 %v552
    %601 = vmatpush1.msra.mxu0 %v551
    %602 = vmatprep.subr.mxu0 %v556
    %603 = vmatpush1.msra.mxu0 %v555
    %604 = vmatprep.subr.mxu0 %v560
    %605 = vmatpush1.msra.mxu0 %v559
    %606 = vmatprep.subr.mxu0 %v564
    %607 = vmatpush1.msra.mxu0 %v563
    %608 = vmatprep.subr.mxu0 0.0
    %609 = vmatpush1.msra.mxu0 0.0
    %610 = vmatprep.subr.mxu0 0.0
    %611 = vmatpush1.msra.mxu0 0.0
    %612 = vmatprep.subr.mxu0 0.0
    %613 = vmatpush1.msra.mxu0 0.0
    %614 = vmatprep.subr.mxu0 0.0
    %615 = vmatpush1.msra.mxu0 0.0
    %616 = vmatprep.subr.mxu0 0.0
    %617 = vmatpush1.msra.mxu0 0.0
    %618 = vmatprep.subr.mxu0 0.0
    %619 = vmatpush1.msra.mxu0 0.0
    %620 = vmatprep.subr.mxu0 0.0
    %621 = vmatpush1.msra.mxu0 0.0
    %622 = vmatprep.subr.mxu0 0.0
    %623 = vmatpush1.msra.mxu0 0.0
    %624 = vmatprep.subr.mxu0 0.0
    %625 = vmatpush1.msra.mxu0 0.0
    %626 = vmatprep.subr.mxu0 0.0
    %627 = vmatpush1.msra.mxu0 0.0
    %628 = vmatprep.subr.mxu0 0.0
    %629 = vmatpush1.msra.mxu0 0.0
    %630 = vmatprep.subr.mxu0 0.0
    %631 = vmatpush1.msra.mxu0 0.0
    %632 = vmatprep.subr.mxu0 0.0
    %633 = vmatpush1.msra.mxu0 0.0
    %634 = vmatprep.subr.mxu0 0.0
    %635 = vmatpush1.msra.mxu0 0.0
    %636 = vmatprep.subr.mxu0 0.0
    %637 = vmatpush1.msra.mxu0 0.0
    %638 = vmatprep.subr.mxu0 0.0
    %639 = vmatpush1.msra.mxu0 0.0
    %640 = vmatprep.subr.mxu0 0.0
    %641 = vmatpush1.msra.mxu0 0.0
    %642 = vmatprep.subr.mxu0 0.0
    %643 = vmatpush1.msra.mxu0 0.0
    %644 = vmatprep.subr.mxu0 0.0
    %645 = vmatpush1.msra.mxu0 0.0
    %646 = vmatprep.subr.mxu0 0.0
    %647 = vmatpush1.msra.mxu0 0.0
    %648 = vmatprep.subr.mxu0 0.0
    %649 = vmatpush1.msra.mxu0 0.0
    %650 = vmatprep.subr.mxu0 0.0
    %651 = vmatpush1.msra.mxu0 0.0
    %652 = vmatprep.subr.mxu0 0.0
    %653 = vmatpush1.msra.mxu0 0.0
    %654 = vmatprep.subr.mxu0 0.0
    %655 = vmatpush1.msra.mxu0 0.0
    %656 = vmatprep.mubr.f32.mxu0 0.0
    %657 = vmatmul.mubr.f32.gmra.mrb[0].mxu0 %v569
    %v658 = vpop.f32.mrb[0].mxu0
    %v659 = vadd.f32 0.0, %v658
    %v660 = vpop.f32.mrb[0].mxu0
    %v661 = vadd.f32 0.0, %v660
    %662 = vmatprep.mubr.f32.mxu0 0.0
    %663 = vmatmul.mubr.f32.gmra.mrb[0].mxu0 %v572
    %v664 = vpop.f32.mrb[0].mxu0
    %v665 = vadd.f32 0.0, %v664
    %v666 = vpop.f32.mrb[0].mxu0
    %v667 = vadd.f32 0.0, %v666
    %668 = vmatprep.mubr.f32.mxu0 0.0
    %669 = vmatmul.mubr.f32.gmra.mrb[0].mxu0 %v575
    %v670 = vpop.f32.mrb[0].mxu0
    %v671 = vadd.f32 0.0, %v670
    %v672 = vpop.f32.mrb[0].mxu0
    %v673 = vadd.f32 0.0, %v672
    %674 = vmatprep.mubr.f32.mxu0 0.0
    %675 = vmatmul.mubr.f32.gmra.mrb[0].mxu0 %v578
    %v676 = vpop.f32.mrb[0].mxu0
    %v677 = vadd.f32 0.0, %v676
    %v678 = vpop.f32.mrb[0].mxu0
    %v679 = vadd.f32 0.0, %v678
    %680 = vmatprep.mubr.f32.mxu0 0.0
    %681 = vmatmul.mubr.f32.gmra.mrb[0].mxu0 %v581
    %v682 = vpop.f32.mrb[0].mxu0
    %v683 = vadd.f32 0.0, %v682
    %v684 = vpop.f32.mrb[0].mxu0
    %v685 = vadd.f32 0.0, %v684
    %686 = vmatprep.mubr.f32.mxu0 0.0
    %687 = vmatmul.mubr.f32.gmra.mrb[0].mxu0 %v584
    %v688 = vpop.f32.mrb[0].mxu0
    %v689 = vadd.f32 0.0, %v688
    %v690 = vpop.f32.mrb[0].mxu0
    %v691 = vadd.f32 0.0, %v690
    %692 = vmatprep.mubr.f32.mxu0 0.0
    %693 = vmatmul.mubr.f32.gmra.mrb[0].mxu0 %v587
    %v694 = vpop.f32.mrb[0].mxu0
    %v695 = vadd.f32 0.0, %v694
    %v696 = vpop.f32.mrb[0].mxu0
    %v697 = vadd.f32 0.0, %v696
    %698 = vmatprep.mubr.f32.mxu0 0.0
    %699 = vmatmul.mubr.f32.gmra.mrb[0].mxu0 %v590
    %v700 = vpop.f32.mrb[0].mxu0
    %v701 = vadd.f32 0.0, %v700
    %v702 = vpop.f32.mrb[0].mxu0
    %v703 = vadd.f32 0.0, %v702
    %704 = vdwg.mxu0
    %705 = vmatprep.subr.mxu0 %v538
    %706 = vmatpush1.msra.mxu0 %v537
    %707 = vmatprep.subr.mxu0 %v542
    %708 = vmatpush1.msra.mxu0 %v541
    %709 = vmatprep.subr.mxu0 %v546
    %710 = vmatpush1.msra.mxu0 %v545
    %711 = vmatprep.subr.mxu0 %v550
    %712 = vmatpush1.msra.mxu0 %v549
    %713 = vmatprep.subr.mxu0 %v554
    %714 = vmatpush1.msra.mxu0 %v553
    %715 = vmatprep.subr.mxu0 %v558
    %716 = vmatpush1.msra.mxu0 %v557
    %717 = vmatprep.subr.mxu0 %v562
    %718 = vmatpush1.msra.mxu0 %v561
    %719 = vmatprep.subr.mxu0 %v566
    %720 = vmatpush1.msra.mxu0 %v565
    %721 = vmatprep.subr.mxu0 0.0
    %722 = vmatpush1.msra.mxu0 0.0
    %723 = vmatprep.subr.mxu0 0.0
    %724 = vmatpush1.msra.mxu0 0.0
    %725 = vmatprep.subr.mxu0 0.0
    %726 = vmatpush1.msra.mxu0 0.0
    %727 = vmatprep.subr.mxu0 0.0
    %728 = vmatpush1.msra.mxu0 0.0
    %729 = vmatprep.subr.mxu0 0.0
    %730 = vmatpush1.msra.mxu0 0.0
    %731 = vmatprep.subr.mxu0 0.0
    %732 = vmatpush1.msra.mxu0 0.0
    %733 = vmatprep.subr.mxu0 0.0
    %734 = vmatpush1.msra.mxu0 0.0
    %735 = vmatprep.subr.mxu0 0.0
    %736 = vmatpush1.msra.mxu0 0.0
    %737 = vmatprep.subr.mxu0 0.0
    %738 = vmatpush1.msra.mxu0 0.0
    %739 = vmatprep.subr.mxu0 0.0
    %740 = vmatpush1.msra.mxu0 0.0
    %741 = vmatprep.subr.mxu0 0.0
    %742 = vmatpush1.msra.mxu0 0.0
    %743 = vmatprep.subr.mxu0 0.0
    %744 = vmatpush1.msra.mxu0 0.0
    %745 = vmatprep.subr.mxu0 0.0
    %746 = vmatpush1.msra.mxu0 0.0
    %747 = vmatprep.subr.mxu0 0.0
    %748 = vmatpush1.msra.mxu0 0.0
    %749 = vmatprep.subr.mxu0 0.0
    %750 = vmatpush1.msra.mxu0 0.0
    %751 = vmatprep.subr.mxu0 0.0
    %752 = vmatpush1.msra.mxu0 0.0
    %753 = vmatprep.subr.mxu0 0.0
    %754 = vmatpush1.msra.mxu0 0.0
    %755 = vmatprep.subr.mxu0 0.0
    %756 = vmatpush1.msra.mxu0 0.0
    %757 = vmatprep.subr.mxu0 0.0
    %758 = vmatpush1.msra.mxu0 0.0
    %759 = vmatprep.subr.mxu0 0.0
    %760 = vmatpush1.msra.mxu0 0.0
    %761 = vmatprep.subr.mxu0 0.0
    %762 = vmatpush1.msra.mxu0 0.0
    %763 = vmatprep.subr.mxu0 0.0
    %764 = vmatpush1.msra.mxu0 0.0
    %765 = vmatprep.subr.mxu0 0.0
    %766 = vmatpush1.msra.mxu0 0.0
    %767 = vmatprep.subr.mxu0 0.0
    %768 = vmatpush1.msra.mxu0 0.0
    %769 = vmatprep.mubr.f32.mxu0 0.0
    %770 = vmatmul.mubr.f32.gmra.mrb[0].mxu0 %v569
    %v771 = vpop.f32.mrb[0].mxu0
    %v772 = vadd.f32 0.0, %v771
    %v773 = vpop.f32.mrb[0].mxu0
    %v774 = vadd.f32 0.0, %v773
    %775 = vmatprep.mubr.f32.mxu0 0.0
    %776 = vmatmul.mubr.f32.gmra.mrb[0].mxu0 %v572
    %v777 = vpop.f32.mrb[0].mxu0
    %v778 = vadd.f32 0.0, %v777
    %v779 = vpop.f32.mrb[0].mxu0
    %v780 = vadd.f32 0.0, %v779
    %781 = vmatprep.mubr.f32.mxu0 0.0
    %782 = vmatmul.mubr.f32.gmra.mrb[0].mxu0 %v575
    %v783 = vpop.f32.mrb[0].mxu0
    %v784 = vadd.f32 0.0, %v783
    %v785 = vpop.f32.mrb[0].mxu0
    %v786 = vadd.f32 0.0, %v785
    %787 = vmatprep.mubr.f32.mxu0 0.0
    %788 = vmatmul.mubr.f32.gmra.mrb[0].mxu0 %v578
    %v789 = vpop.f32.mrb[0].mxu0
    %v790 = vadd.f32 0.0, %v789
    %v791 = vpop.f32.mrb[0].mxu0
    %v792 = vadd.f32 0.0, %v791
    %793 = vmatprep.mubr.f32.mxu0 0.0
    %794 = vmatmul.mubr.f32.gmra.mrb[0].mxu0 %v581
    %v795 = vpop.f32.mrb[0].mxu0
    %v796 = vadd.f32 0.0, %v795
    %v797 = vpop.f32.mrb[0].mxu0
    %v798 = vadd.f32 0.0, %v797
    %799 = vmatprep.mubr.f32.mxu0 0.0
    %800 = vmatmul.mubr.f32.gmra.mrb[0].mxu0 %v584
    %v801 = vpop.f32.mrb[0].mxu0
    %v802 = vadd.f32 0.0, %v801
    %v803 = vpop.f32.mrb[0].mxu0
    %v804 = vadd.f32 0.0, %v803
    %805 = vmatprep.mubr.f32.mxu0 0.0
    %806 = vmatmul.mubr.f32.gmra.mrb[0].mxu0 %v587
    %v807 = vpop.f32.mrb[0].mxu0
    %v808 = vadd.f32 0.0, %v807
    %v809 = vpop.f32.mrb[0].mxu0
    %v810 = vadd.f32 0.0, %v809
    %811 = vmatprep.mubr.f32.mxu0 0.0
    %812 = vmatmul.mubr.f32.gmra.mrb[0].mxu0 %v590
    %v813 = vpop.f32.mrb[0].mxu0
    %v814 = vadd.f32 0.0, %v813
    %v815 = vpop.f32.mrb[0].mxu0
    %v816 = vadd.f32 0.0, %v815
    %817 = vdwg.mxu0
    %vm818 = vcmp.lt.s32.totalorder %v53, 2
    %v819 = vsel %vm818, 1, 0
    %v820 = vcvt.s32.f32 %v819
    %vm821 = vcmp.ge.s32.totalorder %v53, 2
    %vm822 = vcmp.lt.s32.totalorder %v53, 4
    %vm823 = vmand %vm821, %vm822
    %v824 = vsel %vm823, 1, 0
    %v825 = vcvt.s32.f32 %v824
    %s826 = scalar_lea.vmem [#allocation2], 256
    %v827 = vld [vmem:[%s826] ss:$8 sm:$0xf]
    %v829 = vlaneseq
    %v830 = vshrl.u32 %v829, 7
    %v831 = vsub.s32 0, %v830
    %v832 = vrot.slane %v827, %v831
    %v833 = vlaneseq
    %v834 = vshrl.u32 %v833, 7
    %v835 = vsub.s32 1, %v834
    %v836 = vrot.slane %v827, %v835
    %v837 = vlaneseq
    %v838 = vshrl.u32 %v837, 7
    %v839 = vsub.s32 2, %v838
    %v840 = vrot.slane %v827, %v839
    %v841 = vlaneseq
    %v842 = vshrl.u32 %v841, 7
    %v843 = vsub.s32 3, %v842
    %v844 = vrot.slane %v827, %v843
    %v849 = vmul.f32 %v832, %v820
    %v850 = vmul.f32 %v836, %v820
    %v851 = vmul.f32 %v840, %v820
    %v852 = vmul.f32 %v844, %v820
    %s853 = scalar_lea.vmem [#allocation2], 288
    %v854 = vld [vmem:[%s853] ss:$8 sm:$0xf]
    %v856 = vlaneseq
    %v857 = vshrl.u32 %v856, 7
    %v858 = vsub.s32 0, %v857
    %v859 = vrot.slane %v854, %v858
    %v860 = vlaneseq
    %v861 = vshrl.u32 %v860, 7
    %v862 = vsub.s32 1, %v861
    %v863 = vrot.slane %v854, %v862
    %v864 = vlaneseq
    %v865 = vshrl.u32 %v864, 7
    %v866 = vsub.s32 2, %v865
    %v867 = vrot.slane %v854, %v866
    %v868 = vlaneseq
    %v869 = vshrl.u32 %v868, 7
    %v870 = vsub.s32 3, %v869
    %v871 = vrot.slane %v854, %v870
    %v876 = vmul.f32 %v859, %v825
    %v877 = vmul.f32 %v863, %v825
    %v878 = vmul.f32 %v867, %v825
    %v879 = vmul.f32 %v871, %v825
    %v880 = vadd.f32 %v849, %v876
    %v881 = vadd.f32 %v850, %v877
    %v882 = vadd.f32 %v851, %v878
    %v883 = vadd.f32 %v852, %v879
    %v884 = vld [vmem:[#allocation4] sm:$0xff]
    %v885 = vld [vmem:[#allocation4 + $0x8] sm:$0xff]
    %v886 = vld [vmem:[#allocation4 + $0x10] sm:$0xff]
    %v887 = vld [vmem:[#allocation4 + $0x18] sm:$0xff]
    %v888 = vld [vmem:[#allocation4 + $0x20] sm:$0xff]
    %v889 = vld [vmem:[#allocation4 + $0x28] sm:$0xff]
    %v890 = vld [vmem:[#allocation4 + $0x30] sm:$0xff]
    %v891 = vld [vmem:[#allocation4 + $0x38] sm:$0xff]
    %v892 = vld [vmem:[#allocation4 + $0x40] sm:$0xff]
    %v893 = vld [vmem:[#allocation4 + $0x48] sm:$0xff]
    %v894 = vld [vmem:[#allocation4 + $0x50] sm:$0xff]
    %v895 = vld [vmem:[#allocation4 + $0x58] sm:$0xff]
    %v896 = vld [vmem:[#allocation4 + $0x60] sm:$0xff]
    %v897 = vld [vmem:[#allocation4 + $0x68] sm:$0xff]
    %v898 = vld [vmem:[#allocation4 + $0x70] sm:$0xff]
    %v899 = vld [vmem:[#allocation4 + $0x78] sm:$0xff]
    %v900 = vld [vmem:[#allocation4 + $0x80] sm:$0xff]
    %v901 = vld [vmem:[#allocation4 + $0x88] sm:$0xff]
    %v902 = vld [vmem:[#allocation4 + $0x90] sm:$0xff]
    %v903 = vld [vmem:[#allocation4 + $0x98] sm:$0xff]
    %v904 = vld [vmem:[#allocation4 + $0xa0] sm:$0xff]
    %v905 = vld [vmem:[#allocation4 + $0xa8] sm:$0xff]
    %v906 = vld [vmem:[#allocation4 + $0xb0] sm:$0xff]
    %v907 = vld [vmem:[#allocation4 + $0xb8] sm:$0xff]
    %v908 = vld [vmem:[#allocation4 + $0xc0] sm:$0xff]
    %v909 = vld [vmem:[#allocation4 + $0xc8] sm:$0xff]
    %v910 = vld [vmem:[#allocation4 + $0xd0] sm:$0xff]
    %v911 = vld [vmem:[#allocation4 + $0xd8] sm:$0xff]
    %v912 = vld [vmem:[#allocation4 + $0xe0] sm:$0xff]
    %v913 = vld [vmem:[#allocation4 + $0xe8] sm:$0xff]
    %v914 = vld [vmem:[#allocation4 + $0xf0] sm:$0xff]
    %v915 = vld [vmem:[#allocation4 + $0xf8] sm:$0xff]
    %v916 = vld [vmem:[#allocation4 + $0x100] sm:$0xff]
    %v917 = vld [vmem:[#allocation4 + $0x108] sm:$0xff]
    %v918 = vld [vmem:[#allocation4 + $0x110] sm:$0xff]
    %v919 = vld [vmem:[#allocation4 + $0x118] sm:$0xff]
    %v920 = vld [vmem:[#allocation4 + $0x120] sm:$0xff]
    %v921 = vld [vmem:[#allocation4 + $0x128] sm:$0xff]
    %v922 = vld [vmem:[#allocation4 + $0x130] sm:$0xff]
    %v923 = vld [vmem:[#allocation4 + $0x138] sm:$0xff]
    %v924 = vld [vmem:[#allocation4 + $0x140] sm:$0xff]
    %v925 = vld [vmem:[#allocation4 + $0x148] sm:$0xff]
    %v926 = vld [vmem:[#allocation4 + $0x150] sm:$0xff]
    %v927 = vld [vmem:[#allocation4 + $0x158] sm:$0xff]
    %v928 = vld [vmem:[#allocation4 + $0x160] sm:$0xff]
    %v929 = vld [vmem:[#allocation4 + $0x168] sm:$0xff]
    %v930 = vld [vmem:[#allocation4 + $0x170] sm:$0xff]
    %v931 = vld [vmem:[#allocation4 + $0x178] sm:$0xff]
    %v932 = vld [vmem:[#allocation4 + $0x180] sm:$0xff]
    %v933 = vld [vmem:[#allocation4 + $0x188] sm:$0xff]
    %v934 = vld [vmem:[#allocation4 + $0x190] sm:$0xff]
    %v935 = vld [vmem:[#allocation4 + $0x198] sm:$0xff]
    %v936 = vld [vmem:[#allocation4 + $0x1a0] sm:$0xff]
    %v937 = vld [vmem:[#allocation4 + $0x1a8] sm:$0xff]
    %v938 = vld [vmem:[#allocation4 + $0x1b0] sm:$0xff]
    %v939 = vld [vmem:[#allocation4 + $0x1b8] sm:$0xff]
    %v940 = vld [vmem:[#allocation4 + $0x1c0] sm:$0xff]
    %v941 = vld [vmem:[#allocation4 + $0x1c8] sm:$0xff]
    %v942 = vld [vmem:[#allocation4 + $0x1d0] sm:$0xff]
    %v943 = vld [vmem:[#allocation4 + $0x1d8] sm:$0xff]
    %v944 = vld [vmem:[#allocation4 + $0x1e0] sm:$0xff]
    %v945 = vld [vmem:[#allocation4 + $0x1e8] sm:$0xff]
    %v946 = vld [vmem:[#allocation4 + $0x1f0] sm:$0xff]
    %v947 = vld [vmem:[#allocation4 + $0x1f8] sm:$0xff]
    %v948 = vadd.f32 %v659, %v880
    %v949 = vadd.f32 %v661, %v881
    %v950 = vadd.f32 %v772, %v882
    %v951 = vadd.f32 %v774, %v883
    %v1016 = vunpack.c.l.b16 %v884
    %v1017 = vunpack.c.h.b16 %v884
    %v1018 = vunpack.c.l.b16 %v885
    %v1019 = vunpack.c.h.b16 %v885
    %v1020 = vunpack.c.l.b16 %v886
    %v1021 = vunpack.c.h.b16 %v886
    %v1022 = vunpack.c.l.b16 %v887
    %v1023 = vunpack.c.h.b16 %v887
    %v1024 = vunpack.c.l.b16 %v888
    %v1025 = vunpack.c.h.b16 %v888
    %v1026 = vunpack.c.l.b16 %v889
    %v1027 = vunpack.c.h.b16 %v889
    %v1028 = vunpack.c.l.b16 %v890
    %v1029 = vunpack.c.h.b16 %v890
    %v1030 = vunpack.c.l.b16 %v891
    %v1031 = vunpack.c.h.b16 %v891
    %v1032 = vunpack.c.l.b16 %v892
    %v1033 = vunpack.c.h.b16 %v892
    %v1034 = vunpack.c.l.b16 %v893
    %v1035 = vunpack.c.h.b16 %v893
    %v1036 = vunpack.c.l.b16 %v894
    %v1037 = vunpack.c.h.b16 %v894
    %v1038 = vunpack.c.l.b16 %v895
    %v1039 = vunpack.c.h.b16 %v895
    %v1040 = vunpack.c.l.b16 %v896
    %v1041 = vunpack.c.h.b16 %v896
    %v1042 = vunpack.c.l.b16 %v897
    %v1043 = vunpack.c.h.b16 %v897
    %v1044 = vunpack.c.l.b16 %v898
    %v1045 = vunpack.c.h.b16 %v898
    %v1046 = vunpack.c.l.b16 %v899
    %v1047 = vunpack.c.h.b16 %v899
    %v1048 = vunpack.c.l.b16 %v900
    %v1049 = vunpack.c.h.b16 %v900
    %v1050 = vunpack.c.l.b16 %v901
    %v1051 = vunpack.c.h.b16 %v901
    %v1052 = vunpack.c.l.b16 %v902
    %v1053 = vunpack.c.h.b16 %v902
    %v1054 = vunpack.c.l.b16 %v903
    %v1055 = vunpack.c.h.b16 %v903
    %v1056 = vunpack.c.l.b16 %v904
    %v1057 = vunpack.c.h.b16 %v904
    %v1058 = vunpack.c.l.b16 %v905
    %v1059 = vunpack.c.h.b16 %v905
    %v1060 = vunpack.c.l.b16 %v906
    %v1061 = vunpack.c.h.b16 %v906
    %v1062 = vunpack.c.l.b16 %v907
    %v1063 = vunpack.c.h.b16 %v907
    %v1064 = vunpack.c.l.b16 %v908
    %v1065 = vunpack.c.h.b16 %v908
    %v1066 = vunpack.c.l.b16 %v909
    %v1067 = vunpack.c.h.b16 %v909
    %v1068 = vunpack.c.l.b16 %v910
    %v1069 = vunpack.c.h.b16 %v910
    %v1070 = vunpack.c.l.b16 %v911
    %v1071 = vunpack.c.h.b16 %v911
    %v1072 = vunpack.c.l.b16 %v912
    %v1073 = vunpack.c.h.b16 %v912
    %v1074 = vunpack.c.l.b16 %v913
    %v1075 = vunpack.c.h.b16 %v913
    %v1076 = vunpack.c.l.b16 %v914
    %v1077 = vunpack.c.h.b16 %v914
    %v1078 = vunpack.c.l.b16 %v915
    %v1079 = vunpack.c.h.b16 %v915
    %v1080 = vunpack.c.l.b16 %v916
    %v1081 = vunpack.c.h.b16 %v916
    %v1082 = vunpack.c.l.b16 %v917
    %v1083 = vunpack.c.h.b16 %v917
    %v1084 = vunpack.c.l.b16 %v918
    %v1085 = vunpack.c.h.b16 %v918
    %v1086 = vunpack.c.l.b16 %v919
    %v1087 = vunpack.c.h.b16 %v919
    %v1088 = vunpack.c.l.b16 %v920
    %v1089 = vunpack.c.h.b16 %v920
    %v1090 = vunpack.c.l.b16 %v921
    %v1091 = vunpack.c.h.b16 %v921
    %v1092 = vunpack.c.l.b16 %v922
    %v1093 = vunpack.c.h.b16 %v922
    %v1094 = vunpack.c.l.b16 %v923
    %v1095 = vunpack.c.h.b16 %v923
    %v1096 = vunpack.c.l.b16 %v924
    %v1097 = vunpack.c.h.b16 %v924
    %v1098 = vunpack.c.l.b16 %v925
    %v1099 = vunpack.c.h.b16 %v925
    %v1100 = vunpack.c.l.b16 %v926
    %v1101 = vunpack.c.h.b16 %v926
    %v1102 = vunpack.c.l.b16 %v927
    %v1103 = vunpack.c.h.b16 %v927
    %v1104 = vunpack.c.l.b16 %v928
    %v1105 = vunpack.c.h.b16 %v928
    %v1106 = vunpack.c.l.b16 %v929
    %v1107 = vunpack.c.h.b16 %v929
    %v1108 = vunpack.c.l.b16 %v930
    %v1109 = vunpack.c.h.b16 %v930
    %v1110 = vunpack.c.l.b16 %v931
    %v1111 = vunpack.c.h.b16 %v931
    %v1112 = vunpack.c.l.b16 %v932
    %v1113 = vunpack.c.h.b16 %v932
    %v1114 = vunpack.c.l.b16 %v933
    %v1115 = vunpack.c.h.b16 %v933
    %v1116 = vunpack.c.l.b16 %v934
    %v1117 = vunpack.c.h.b16 %v934
    %v1118 = vunpack.c.l.b16 %v935
    %v1119 = vunpack.c.h.b16 %v935
    %v1120 = vunpack.c.l.b16 %v936
    %v1121 = vunpack.c.h.b16 %v936
    %v1122 = vunpack.c.l.b16 %v937
    %v1123 = vunpack.c.h.b16 %v937
    %v1124 = vunpack.c.l.b16 %v938
    %v1125 = vunpack.c.h.b16 %v938
    %v1126 = vunpack.c.l.b16 %v939
    %v1127 = vunpack.c.h.b16 %v939
    %v1128 = vunpack.c.l.b16 %v940
    %v1129 = vunpack.c.h.b16 %v940
    %v1130 = vunpack.c.l.b16 %v941
    %v1131 = vunpack.c.h.b16 %v941
    %v1132 = vunpack.c.l.b16 %v942
    %v1133 = vunpack.c.h.b16 %v942
    %v1134 = vunpack.c.l.b16 %v943
    %v1135 = vunpack.c.h.b16 %v943
    %v1136 = vunpack.c.l.b16 %v944
    %v1137 = vunpack.c.h.b16 %v944
    %v1138 = vunpack.c.l.b16 %v945
    %v1139 = vunpack.c.h.b16 %v945
    %v1140 = vunpack.c.l.b16 %v946
    %v1141 = vunpack.c.h.b16 %v946
    %v1142 = vunpack.c.l.b16 %v947
    %v1143 = vunpack.c.h.b16 %v947
    %v1144 = vpack.c.b16 %v1020, %v1016
    %v1145 = vpack.c.b16 %v1021, %v1017
    %v1146 = vpack.c.b16 %v1022, %v1018
    %v1147 = vpack.c.b16 %v1023, %v1019
    %v1148 = vpack.c.b16 %v1028, %v1024
    %v1149 = vpack.c.b16 %v1029, %v1025
    %v1150 = vpack.c.b16 %v1030, %v1026
    %v1151 = vpack.c.b16 %v1031, %v1027
    %v1152 = vpack.c.b16 %v1036, %v1032
    %v1153 = vpack.c.b16 %v1037, %v1033
    %v1154 = vpack.c.b16 %v1038, %v1034
    %v1155 = vpack.c.b16 %v1039, %v1035
    %v1156 = vpack.c.b16 %v1044, %v1040
    %v1157 = vpack.c.b16 %v1045, %v1041
    %v1158 = vpack.c.b16 %v1046, %v1042
    %v1159 = vpack.c.b16 %v1047, %v1043
    %v1160 = vpack.c.b16 %v1052, %v1048
    %v1161 = vpack.c.b16 %v1053, %v1049
    %v1162 = vpack.c.b16 %v1054, %v1050
    %v1163 = vpack.c.b16 %v1055, %v1051
    %v1164 = vpack.c.b16 %v1060, %v1056
    %v1165 = vpack.c.b16 %v1061, %v1057
    %v1166 = vpack.c.b16 %v1062, %v1058
    %v1167 = vpack.c.b16 %v1063, %v1059
    %v1168 = vpack.c.b16 %v1068, %v1064
    %v1169 = vpack.c.b16 %v1069, %v1065
    %v1170 = vpack.c.b16 %v1070, %v1066
    %v1171 = vpack.c.b16 %v1071, %v1067
    %v1172 = vpack.c.b16 %v1076, %v1072
    %v1173 = vpack.c.b16 %v1077, %v1073
    %v1174 = vpack.c.b16 %v1078, %v1074
    %v1175 = vpack.c.b16 %v1079, %v1075
    %v1176 = vpack.c.b16 %v1084, %v1080
    %v1177 = vpack.c.b16 %v1085, %v1081
    %v1178 = vpack.c.b16 %v1086, %v1082
    %v1179 = vpack.c.b16 %v1087, %v1083
    %v1180 = vpack.c.b16 %v1092, %v1088
    %v1181 = vpack.c.b16 %v1093, %v1089
    %v1182 = vpack.c.b16 %v1094, %v1090
    %v1183 = vpack.c.b16 %v1095, %v1091
    %v1184 = vpack.c.b16 %v1100, %v1096
    %v1185 = vpack.c.b16 %v1101, %v1097
    %v1186 = vpack.c.b16 %v1102, %v1098
    %v1187 = vpack.c.b16 %v1103, %v1099
    %v1188 = vpack.c.b16 %v1108, %v1104
    %v1189 = vpack.c.b16 %v1109, %v1105
    %v1190 = vpack.c.b16 %v1110, %v1106
    %v1191 = vpack.c.b16 %v1111, %v1107
    %v1192 = vpack.c.b16 %v1116, %v1112
    %v1193 = vpack.c.b16 %v1117, %v1113
    %v1194 = vpack.c.b16 %v1118, %v1114
    %v1195 = vpack.c.b16 %v1119, %v1115
    %v1196 = vpack.c.b16 %v1124, %v1120
    %v1197 = vpack.c.b16 %v1125, %v1121
    %v1198 = vpack.c.b16 %v1126, %v1122
    %v1199 = vpack.c.b16 %v1127, %v1123
    %v1200 = vpack.c.b16 %v1132, %v1128
    %v1201 = vpack.c.b16 %v1133, %v1129
    %v1202 = vpack.c.b16 %v1134, %v1130
    %v1203 = vpack.c.b16 %v1135, %v1131
    %v1204 = vpack.c.b16 %v1140, %v1136
    %v1205 = vpack.c.b16 %v1141, %v1137
    %v1206 = vpack.c.b16 %v1142, %v1138
    %v1207 = vpack.c.b16 %v1143, %v1139
    %1272 = vmatprep.subr.bf16.mxu0 %v1145
    %1273 = vmatpush1.bf16.msra.mxu0 %v1144
    %1274 = vmatprep.subr.bf16.mxu0 %v1149
    %1275 = vmatpush1.bf16.msra.mxu0 %v1148
    %1276 = vmatprep.subr.bf16.mxu0 %v1153
    %1277 = vmatpush1.bf16.msra.mxu0 %v1152
    %1278 = vmatprep.subr.bf16.mxu0 %v1157
    %1279 = vmatpush1.bf16.msra.mxu0 %v1156
    %1280 = vmatprep.subr.bf16.mxu0 %v1161
    %1281 = vmatpush1.bf16.msra.mxu0 %v1160
    %1282 = vmatprep.subr.bf16.mxu0 %v1165
    %1283 = vmatpush1.bf16.msra.mxu0 %v1164
    %1284 = vmatprep.subr.bf16.mxu0 %v1169
    %1285 = vmatpush1.bf16.msra.mxu0 %v1168
    %1286 = vmatprep.subr.bf16.mxu0 %v1173
    %1287 = vmatpush1.bf16.msra.mxu0 %v1172
    %1288 = vmatprep.subr.bf16.mxu0 %v1177
    %1289 = vmatpush1.bf16.msra.mxu0 %v1176
    %1290 = vmatprep.subr.bf16.mxu0 %v1181
    %1291 = vmatpush1.bf16.msra.mxu0 %v1180
    %1292 = vmatprep.subr.bf16.mxu0 %v1185
    %1293 = vmatpush1.bf16.msra.mxu0 %v1184
    %1294 = vmatprep.subr.bf16.mxu0 %v1189
    %1295 = vmatpush1.bf16.msra.mxu0 %v1188
    %1296 = vmatprep.subr.bf16.mxu0 %v1193
    %1297 = vmatpush1.bf16.msra.mxu0 %v1192
    %1298 = vmatprep.subr.bf16.mxu0 %v1197
    %1299 = vmatpush1.bf16.msra.mxu0 %v1196
    %1300 = vmatprep.subr.bf16.mxu0 %v1201
    %1301 = vmatpush1.bf16.msra.mxu0 %v1200
    %1302 = vmatprep.subr.bf16.mxu0 %v1205
    %1303 = vmatpush1.bf16.msra.mxu0 %v1204
    %1304 = vmatprep.mubr.bf16.mxu0 0
    %1305 = vmatmul.mubr.bf16.gmra.mrb[0].mxu0 0
    %v1306 = vpop.f32.mrb[0].mxu0
    %v1307 = vadd.f32 0.0, %v1306
    %v1308 = vpop.f32.mrb[0].mxu0
    %v1309 = vadd.f32 0.0, %v1308
    %v1310 = vpop.f32.mrb[0].mxu0
    %v1311 = vpop.f32.mrb[0].mxu0
    %1312 = vdwg.mxu0
    %1313 = vmatprep.subr.bf16.mxu0 %v1147
    %1314 = vmatpush1.bf16.msra.mxu0 %v1146
    %1315 = vmatprep.subr.bf16.mxu0 %v1151
    %1316 = vmatpush1.bf16.msra.mxu0 %v1150
    %1317 = vmatprep.subr.bf16.mxu0 %v1155
    %1318 = vmatpush1.bf16.msra.mxu0 %v1154
    %1319 = vmatprep.subr.bf16.mxu0 %v1159
    %1320 = vmatpush1.bf16.msra.mxu0 %v1158
    %1321 = vmatprep.subr.bf16.mxu0 %v1163
    %1322 = vmatpush1.bf16.msra.mxu0 %v1162
    %1323 = vmatprep.subr.bf16.mxu0 %v1167
    %1324 = vmatpush1.bf16.msra.mxu0 %v1166
    %1325 = vmatprep.subr.bf16.mxu0 %v1171
    %1326 = vmatpush1.bf16.msra.mxu0 %v1170
    %1327 = vmatprep.subr.bf16.mxu0 %v1175
    %1328 = vmatpush1.bf16.msra.mxu0 %v1174
    %1329 = vmatprep.subr.bf16.mxu0 %v1179
    %1330 = vmatpush1.bf16.msra.mxu0 %v1178
    %1331 = vmatprep.subr.bf16.mxu0 %v1183
    %1332 = vmatpush1.bf16.msra.mxu0 %v1182
    %1333 = vmatprep.subr.bf16.mxu0 %v1187
    %1334 = vmatpush1.bf16.msra.mxu0 %v1186
    %1335 = vmatprep.subr.bf16.mxu0 %v1191
    %1336 = vmatpush1.bf16.msra.mxu0 %v1190
    %1337 = vmatprep.subr.bf16.mxu0 %v1195
    %1338 = vmatpush1.bf16.msra.mxu0 %v1194
    %1339 = vmatprep.subr.bf16.mxu0 %v1199
    %1340 = vmatpush1.bf16.msra.mxu0 %v1198
    %1341 = vmatprep.subr.bf16.mxu0 %v1203
    %1342 = vmatpush1.bf16.msra.mxu0 %v1202
    %1343 = vmatprep.subr.bf16.mxu0 %v1207
    %1344 = vmatpush1.bf16.msra.mxu0 %v1206
    %1345 = vmatprep.mubr.bf16.mxu0 0
    %1346 = vmatmul.mubr.bf16.gmra.mrb[0].mxu0 0
    %v1347 = vpop.f32.mrb[0].mxu0
    %v1348 = vadd.f32 0.0, %v1347
    %v1349 = vpop.f32.mrb[0].mxu0
    %v1350 = vadd.f32 0.0, %v1349
    %v1351 = vpop.f32.mrb[0].mxu0
    %v1352 = vpop.f32.mrb[0].mxu0
    %1353 = vdwg.mxu0
    %v1354 = vadd.f32 %v948, %v1307
    %v1355 = vadd.f32 %v949, %v1309
    %v1356 = vadd.f32 %v950, %v1348
    %v1357 = vadd.f32 %v951, %v1350
    %v1358 = vxor.u32 %v1354, 2147483648
    %v1359 = vmul.f32 %v1358, 1.442695
    %v1360 = vpow.pop %v1359
    %v1361 = vadd.f32 %v1360, 1.0
    %v1362 = vrcp.pop %v1361
    %v1363 = vmul.f32 1.0, %v1362
    %v1364 = vxor.u32 %v1355, 2147483648
    %v1365 = vmul.f32 %v1364, 1.442695
    %v1366 = vpow.pop %v1365
    %v1367 = vadd.f32 %v1366, 1.0
    %v1368 = vrcp.pop %v1367
    %v1369 = vmul.f32 1.0, %v1368
    %v1370 = vtanh.pop %v1356
    %v1371 = vxor.u32 %v1357, 2147483648
    %v1372 = vmul.f32 %v1371, 1.442695
    %v1373 = vpow.pop %v1372
    %v1374 = vadd.f32 %v1373, 1.0
    %v1375 = vrcp.pop %v1374
    %v1376 = vmul.f32 1.0, %v1375
    %v1377 = vmul.f32 %v1369, 0.0
    %v1378 = vmul.f32 %v1363, %v1370
    %v1379 = vadd.f32 %v1377, %v1378
    %v1380 = vtanh.pop %v1379
    %v1381 = vmul.f32 %v1376, %v1380
    %v1382 = vmul.f32 %v1381, %v820
    %v1383 = vmul.f32 %v1381, %v825
    %v1384 = vpack.c.bf16 %v1382, %v1382
    %v1385 = vpack.c.bf16 %v1383, %v1383
    %v1386 = vadd.f32 %v665, %v880
    %v1387 = vadd.f32 %v667, %v881
    %v1388 = vadd.f32 %v778, %v882
    %v1389 = vadd.f32 %v780, %v883
    %1390 = vmatprep.subr.bf16.mxu0 %v1145
    %1391 = vmatpush1.bf16.msra.mxu0 %v1144
    %1392 = vmatprep.subr.bf16.mxu0 %v1149
    %1393 = vmatpush1.bf16.msra.mxu0 %v1148
    %1394 = vmatprep.subr.bf16.mxu0 %v1153
    %1395 = vmatpush1.bf16.msra.mxu0 %v1152
    %1396 = vmatprep.subr.bf16.mxu0 %v1157
    %1397 = vmatpush1.bf16.msra.mxu0 %v1156
    %1398 = vmatprep.subr.bf16.mxu0 %v1161
    %1399 = vmatpush1.bf16.msra.mxu0 %v1160
    %1400 = vmatprep.subr.bf16.mxu0 %v1165
    %1401 = vmatpush1.bf16.msra.mxu0 %v1164
    %1402 = vmatprep.subr.bf16.mxu0 %v1169
    %1403 = vmatpush1.bf16.msra.mxu0 %v1168
    %1404 = vmatprep.subr.bf16.mxu0 %v1173
    %1405 = vmatpush1.bf16.msra.mxu0 %v1172
    %1406 = vmatprep.subr.bf16.mxu0 %v1177
    %1407 = vmatpush1.bf16.msra.mxu0 %v1176
    %1408 = vmatprep.subr.bf16.mxu0 %v1181
    %1409 = vmatpush1.bf16.msra.mxu0 %v1180
    %1410 = vmatprep.subr.bf16.mxu0 %v1185
    %1411 = vmatpush1.bf16.msra.mxu0 %v1184
    %1412 = vmatprep.subr.bf16.mxu0 %v1189
    %1413 = vmatpush1.bf16.msra.mxu0 %v1188
    %1414 = vmatprep.subr.bf16.mxu0 %v1193
    %1415 = vmatpush1.bf16.msra.mxu0 %v1192
    %1416 = vmatprep.subr.bf16.mxu0 %v1197
    %1417 = vmatpush1.bf16.msra.mxu0 %v1196
    %1418 = vmatprep.subr.bf16.mxu0 %v1201
    %1419 = vmatpush1.bf16.msra.mxu0 %v1200
    %1420 = vmatprep.subr.bf16.mxu0 %v1205
    %1421 = vmatpush1.bf16.msra.mxu0 %v1204
    %1422 = vmatprep.mubr.bf16.mxu0 %v1385
    %1423 = vmatmul.mubr.bf16.gmra.mrb[0].mxu0 %v1384
    %v1424 = vpop.f32.mrb[0].mxu0
    %v1425 = vadd.f32 0.0, %v1424
    %v1426 = vpop.f32.mrb[0].mxu0
    %v1427 = vadd.f32 0.0, %v1426
    %v1428 = vpop.f32.mrb[0].mxu0
    %v1429 = vpop.f32.mrb[0].mxu0
    %1430 = vdwg.mxu0
    %1431 = vmatprep.subr.bf16.mxu0 %v1147
    %1432 = vmatpush1.bf16.msra.mxu0 %v1146
    %1433 = vmatprep.subr.bf16.mxu0 %v1151
    %1434 = vmatpush1.bf16.msra.mxu0 %v1150
    %1435 = vmatprep.subr.bf16.mxu0 %v1155
    %1436 = vmatpush1.bf16.msra.mxu0 %v1154
    %1437 = vmatprep.subr.bf16.mxu0 %v1159
    %1438 = vmatpush1.bf16.msra.mxu0 %v1158
    %1439 = vmatprep.subr.bf16.mxu0 %v1163
    %1440 = vmatpush1.bf16.msra.mxu0 %v1162
    %1441 = vmatprep.subr.bf16.mxu0 %v1167
    %1442 = vmatpush1.bf16.msra.mxu0 %v1166
    %1443 = vmatprep.subr.bf16.mxu0 %v1171
    %1444 = vmatpush1.bf16.msra.mxu0 %v1170
    %1445 = vmatprep.subr.bf16.mxu0 %v1175
    %1446 = vmatpush1.bf16.msra.mxu0 %v1174
    %1447 = vmatprep.subr.bf16.mxu0 %v1179
    %1448 = vmatpush1.bf16.msra.mxu0 %v1178
    %1449 = vmatprep.subr.bf16.mxu0 %v1183
    %1450 = vmatpush1.bf16.msra.mxu0 %v1182
    %1451 = vmatprep.subr.bf16.mxu0 %v1187
    %1452 = vmatpush1.bf16.msra.mxu0 %v1186
    %1453 = vmatprep.subr.bf16.mxu0 %v1191
    %1454 = vmatpush1.bf16.msra.mxu0 %v1190
    %1455 = vmatprep.subr.bf16.mxu0 %v1195
    %1456 = vmatpush1.bf16.msra.mxu0 %v1194
    %1457 = vmatprep.subr.bf16.mxu0 %v1199
    %1458 = vmatpush1.bf16.msra.mxu0 %v1198
    %1459 = vmatprep.subr.bf16.mxu0 %v1203
    %1460 = vmatpush1.bf16.msra.mxu0 %v1202
    %1461 = vmatprep.subr.bf16.mxu0 %v1207
    %1462 = vmatpush1.bf16.msra.mxu0 %v1206
    %1463 = vmatprep.mubr.bf16.mxu0 %v1385
    %1464 = vmatmul.mubr.bf16.gmra.mrb[0].mxu0 %v1384
    %v1465 = vpop.f32.mrb[0].mxu0
    %v1466 = vadd.f32 0.0, %v1465
    %v1467 = vpop.f32.mrb[0].mxu0
    %v1468 = vadd.f32 0.0, %v1467
    %v1469 = vpop.f32.mrb[0].mxu0
    %v1470 = vpop.f32.mrb[0].mxu0
    %1471 = vdwg.mxu0
    %v1472 = vadd.f32 %v1386, %v1425
    %v1473 = vadd.f32 %v1387, %v1427
    %v1474 = vadd.f32 %v1388, %v1466
    %v1475 = vadd.f32 %v1389, %v1468
    %v1476 = vxor.u32 %v1472, 2147483648
    %v1477 = vmul.f32 %v1476, 1.442695
    %v1478 = vpow.pop %v1477
    %v1479 = vadd.f32 %v1478, 1.0
    %v1480 = vrcp.pop %v1479
    %v1481 = vmul.f32 1.0, %v1480
    %v1482 = vxor.u32 %v1473, 2147483648
    %v1483 = vmul.f32 %v1482, 1.442695
    %v1484 = vpow.pop %v1483
    %v1485 = vadd.f32 %v1484, 1.0
    %v1486 = vrcp.pop %v1485
    %v1487 = vmul.f32 1.0, %v1486
    %v1488 = vtanh.pop %v1474
    %v1489 = vxor.u32 %v1475, 2147483648
    %v1490 = vmul.f32 %v1489, 1.442695
    %v1491 = vpow.pop %v1490
    %v1492 = vadd.f32 %v1491, 1.0
    %v1493 = vrcp.pop %v1492
    %v1494 = vmul.f32 1.0, %v1493
    %v1495 = vmul.f32 %v1487, %v1379
    %v1496 = vmul.f32 %v1481, %v1488
    %v1497 = vadd.f32 %v1495, %v1496
    %v1498 = vtanh.pop %v1497
    %v1499 = vmul.f32 %v1494, %v1498
    %v1500 = vmul.f32 %v1499, %v820
    %v1501 = vmul.f32 %v1499, %v825
    %v1502 = vpack.c.bf16 %v1500, %v1500
    %v1503 = vpack.c.bf16 %v1501, %v1501
    %v1504 = vadd.f32 %v671, %v880
    %v1505 = vadd.f32 %v673, %v881
    %v1506 = vadd.f32 %v784, %v882
    %v1507 = vadd.f32 %v786, %v883
    %1508 = vmatprep.subr.bf16.mxu0 %v1145
    %1509 = vmatpush1.bf16.msra.mxu0 %v1144
    %1510 = vmatprep.subr.bf16.mxu0 %v1149
    %1511 = vmatpush1.bf16.msra.mxu0 %v1148
    %1512 = vmatprep.subr.bf16.mxu0 %v1153
    %1513 = vmatpush1.bf16.msra.mxu0 %v1152
    %1514 = vmatprep.subr.bf16.mxu0 %v1157
    %1515 = vmatpush1.bf16.msra.mxu0 %v1156
    %1516 = vmatprep.subr.bf16.mxu0 %v1161
    %1517 = vmatpush1.bf16.msra.mxu0 %v1160
    %1518 = vmatprep.subr.bf16.mxu0 %v1165
    %1519 = vmatpush1.bf16.msra.mxu0 %v1164
    %1520 = vmatprep.subr.bf16.mxu0 %v1169
    %1521 = vmatpush1.bf16.msra.mxu0 %v1168
    %1522 = vmatprep.subr.bf16.mxu0 %v1173
    %1523 = vmatpush1.bf16.msra.mxu0 %v1172
    %1524 = vmatprep.subr.bf16.mxu0 %v1177
    %1525 = vmatpush1.bf16.msra.mxu0 %v1176
    %1526 = vmatprep.subr.bf16.mxu0 %v1181
    %1527 = vmatpush1.bf16.msra.mxu0 %v1180
    %1528 = vmatprep.subr.bf16.mxu0 %v1185
    %1529 = vmatpush1.bf16.msra.mxu0 %v1184
    %1530 = vmatprep.subr.bf16.mxu0 %v1189
    %1531 = vmatpush1.bf16.msra.mxu0 %v1188
    %1532 = vmatprep.subr.bf16.mxu0 %v1193
    %1533 = vmatpush1.bf16.msra.mxu0 %v1192
    %1534 = vmatprep.subr.bf16.mxu0 %v1197
    %1535 = vmatpush1.bf16.msra.mxu0 %v1196
    %1536 = vmatprep.subr.bf16.mxu0 %v1201
    %1537 = vmatpush1.bf16.msra.mxu0 %v1200
    %1538 = vmatprep.subr.bf16.mxu0 %v1205
    %1539 = vmatpush1.bf16.msra.mxu0 %v1204
    %1540 = vmatprep.mubr.bf16.mxu0 %v1503
    %1541 = vmatmul.mubr.bf16.gmra.mrb[0].mxu0 %v1502
    %v1542 = vpop.f32.mrb[0].mxu0
    %v1543 = vadd.f32 0.0, %v1542
    %v1544 = vpop.f32.mrb[0].mxu0
    %v1545 = vadd.f32 0.0, %v1544
    %v1546 = vpop.f32.mrb[0].mxu0
    %v1547 = vpop.f32.mrb[0].mxu0
    %1548 = vdwg.mxu0
    %1549 = vmatprep.subr.bf16.mxu0 %v1147
    %1550 = vmatpush1.bf16.msra.mxu0 %v1146
    %1551 = vmatprep.subr.bf16.mxu0 %v1151
    %1552 = vmatpush1.bf16.msra.mxu0 %v1150
    %1553 = vmatprep.subr.bf16.mxu0 %v1155
    %1554 = vmatpush1.bf16.msra.mxu0 %v1154
    %1555 = vmatprep.subr.bf16.mxu0 %v1159
    %1556 = vmatpush1.bf16.msra.mxu0 %v1158
    %1557 = vmatprep.subr.bf16.mxu0 %v1163
    %1558 = vmatpush1.bf16.msra.mxu0 %v1162
    %1559 = vmatprep.subr.bf16.mxu0 %v1167
    %1560 = vmatpush1.bf16.msra.mxu0 %v1166
    %1561 = vmatprep.subr.bf16.mxu0 %v1171
    %1562 = vmatpush1.bf16.msra.mxu0 %v1170
    %1563 = vmatprep.subr.bf16.mxu0 %v1175
    %1564 = vmatpush1.bf16.msra.mxu0 %v1174
    %1565 = vmatprep.subr.bf16.mxu0 %v1179
    %1566 = vmatpush1.bf16.msra.mxu0 %v1178
    %1567 = vmatprep.subr.bf16.mxu0 %v1183
    %1568 = vmatpush1.bf16.msra.mxu0 %v1182
    %1569 = vmatprep.subr.bf16.mxu0 %v1187
    %1570 = vmatpush1.bf16.msra.mxu0 %v1186
    %1571 = vmatprep.subr.bf16.mxu0 %v1191
    %1572 = vmatpush1.bf16.msra.mxu0 %v1190
    %1573 = vmatprep.subr.bf16.mxu0 %v1195
    %1574 = vmatpush1.bf16.msra.mxu0 %v1194
    %1575 = vmatprep.subr.bf16.mxu0 %v1199
    %1576 = vmatpush1.bf16.msra.mxu0 %v1198
    %1577 = vmatprep.subr.bf16.mxu0 %v1203
    %1578 = vmatpush1.bf16.msra.mxu0 %v1202
    %1579 = vmatprep.subr.bf16.mxu0 %v1207
    %1580 = vmatpush1.bf16.msra.mxu0 %v1206
    %1581 = vmatprep.mubr.bf16.mxu0 %v1503
    %1582 = vmatmul.mubr.bf16.gmra.mrb[0].mxu0 %v1502
    %v1583 = vpop.f32.mrb[0].mxu0
    %v1584 = vadd.f32 0.0, %v1583
    %v1585 = vpop.f32.mrb[0].mxu0
    %v1586 = vadd.f32 0.0, %v1585
    %v1587 = vpop.f32.mrb[0].mxu0
    %v1588 = vpop.f32.mrb[0].mxu0
    %1589 = vdwg.mxu0
    %v1590 = vadd.f32 %v1504, %v1543
    %v1591 = vadd.f32 %v1505, %v1545
    %v1592 = vadd.f32 %v1506, %v1584
    %v1593 = vadd.f32 %v1507, %v1586
    %v1594 = vxor.u32 %v1590, 2147483648
    %v1595 = vmul.f32 %v1594, 1.442695
    %v1596 = vpow.pop %v1595
    %v1597 = vadd.f32 %v1596, 1.0
    %v1598 = vrcp.pop %v1597
    %v1599 = vmul.f32 1.0, %v1598
    %v1600 = vxor.u32 %v1591, 2147483648
    %v1601 = vmul.f32 %v1600, 1.442695
    %v1602 = vpow.pop %v1601
    %v1603 = vadd.f32 %v1602, 1.0
    %v1604 = vrcp.pop %v1603
    %v1605 = vmul.f32 1.0, %v1604
    %v1606 = vtanh.pop %v1592
    %v1607 = vxor.u32 %v1593, 2147483648
    %v1608 = vmul.f32 %v1607, 1.442695
    %v1609 = vpow.pop %v1608
    %v1610 = vadd.f32 %v1609, 1.0
    %v1611 = vrcp.pop %v1610
    %v1612 = vmul.f32 1.0, %v1611
    %v1613 = vmul.f32 %v1605, %v1497
    %v1614 = vmul.f32 %v1599, %v1606
    %v1615 = vadd.f32 %v1613, %v1614
    %v1616 = vtanh.pop %v1615
    %v1617 = vmul.f32 %v1612, %v1616
    %v1618 = vmul.f32 %v1617, %v820
    %v1619 = vmul.f32 %v1617, %v825
    %v1620 = vpack.c.bf16 %v1618, %v1618
    %v1621 = vpack.c.bf16 %v1619, %v1619
    %v1622 = vadd.f32 %v677, %v880
    %v1623 = vadd.f32 %v679, %v881
    %v1624 = vadd.f32 %v790, %v882
    %v1625 = vadd.f32 %v792, %v883
    %1626 = vmatprep.subr.bf16.mxu0 %v1145
    %1627 = vmatpush1.bf16.msra.mxu0 %v1144
    %1628 = vmatprep.subr.bf16.mxu0 %v1149
    %1629 = vmatpush1.bf16.msra.mxu0 %v1148
    %1630 = vmatprep.subr.bf16.mxu0 %v1153
    %1631 = vmatpush1.bf16.msra.mxu0 %v1152
    %1632 = vmatprep.subr.bf16.mxu0 %v1157
    %1633 = vmatpush1.bf16.msra.mxu0 %v1156
    %1634 = vmatprep.subr.bf16.mxu0 %v1161
    %1635 = vmatpush1.bf16.msra.mxu0 %v1160
    %1636 = vmatprep.subr.bf16.mxu0 %v1165
    %1637 = vmatpush1.bf16.msra.mxu0 %v1164
    %1638 = vmatprep.subr.bf16.mxu0 %v1169
    %1639 = vmatpush1.bf16.msra.mxu0 %v1168
    %1640 = vmatprep.subr.bf16.mxu0 %v1173
    %1641 = vmatpush1.bf16.msra.mxu0 %v1172
    %1642 = vmatprep.subr.bf16.mxu0 %v1177
    %1643 = vmatpush1.bf16.msra.mxu0 %v1176
    %1644 = vmatprep.subr.bf16.mxu0 %v1181
    %1645 = vmatpush1.bf16.msra.mxu0 %v1180
    %1646 = vmatprep.subr.bf16.mxu0 %v1185
    %1647 = vmatpush1.bf16.msra.mxu0 %v1184
    %1648 = vmatprep.subr.bf16.mxu0 %v1189
    %1649 = vmatpush1.bf16.msra.mxu0 %v1188
    %1650 = vmatprep.subr.bf16.mxu0 %v1193
    %1651 = vmatpush1.bf16.msra.mxu0 %v1192
    %1652 = vmatprep.subr.bf16.mxu0 %v1197
    %1653 = vmatpush1.bf16.msra.mxu0 %v1196
    %1654 = vmatprep.subr.bf16.mxu0 %v1201
    %1655 = vmatpush1.bf16.msra.mxu0 %v1200
    %1656 = vmatprep.subr.bf16.mxu0 %v1205
    %1657 = vmatpush1.bf16.msra.mxu0 %v1204
    %1658 = vmatprep.mubr.bf16.mxu0 %v1621
    %1659 = vmatmul.mubr.bf16.gmra.mrb[0].mxu0 %v1620
    %v1660 = vpop.f32.mrb[0].mxu0
    %v1661 = vadd.f32 0.0, %v1660
    %v1662 = vpop.f32.mrb[0].mxu0
    %v1663 = vadd.f32 0.0, %v1662
    %v1664 = vpop.f32.mrb[0].mxu0
    %v1665 = vpop.f32.mrb[0].mxu0
    %1666 = vdwg.mxu0
    %1667 = vmatprep.subr.bf16.mxu0 %v1147
    %1668 = vmatpush1.bf16.msra.mxu0 %v1146
    %1669 = vmatprep.subr.bf16.mxu0 %v1151
    %1670 = vmatpush1.bf16.msra.mxu0 %v1150
    %1671 = vmatprep.subr.bf16.mxu0 %v1155
    %1672 = vmatpush1.bf16.msra.mxu0 %v1154
    %1673 = vmatprep.subr.bf16.mxu0 %v1159
    %1674 = vmatpush1.bf16.msra.mxu0 %v1158
    %1675 = vmatprep.subr.bf16.mxu0 %v1163
    %1676 = vmatpush1.bf16.msra.mxu0 %v1162
    %1677 = vmatprep.subr.bf16.mxu0 %v1167
    %1678 = vmatpush1.bf16.msra.mxu0 %v1166
    %1679 = vmatprep.subr.bf16.mxu0 %v1171
    %1680 = vmatpush1.bf16.msra.mxu0 %v1170
    %1681 = vmatprep.subr.bf16.mxu0 %v1175
    %1682 = vmatpush1.bf16.msra.mxu0 %v1174
    %1683 = vmatprep.subr.bf16.mxu0 %v1179
    %1684 = vmatpush1.bf16.msra.mxu0 %v1178
    %1685 = vmatprep.subr.bf16.mxu0 %v1183
    %1686 = vmatpush1.bf16.msra.mxu0 %v1182
    %1687 = vmatprep.subr.bf16.mxu0 %v1187
    %1688 = vmatpush1.bf16.msra.mxu0 %v1186
    %1689 = vmatprep.subr.bf16.mxu0 %v1191
    %1690 = vmatpush1.bf16.msra.mxu0 %v1190
    %1691 = vmatprep.subr.bf16.mxu0 %v1195
    %1692 = vmatpush1.bf16.msra.mxu0 %v1194
    %1693 = vmatprep.subr.bf16.mxu0 %v1199
    %1694 = vmatpush1.bf16.msra.mxu0 %v1198
    %1695 = vmatprep.subr.bf16.mxu0 %v1203
    %1696 = vmatpush1.bf16.msra.mxu0 %v1202
    %1697 = vmatprep.subr.bf16.mxu0 %v1207
    %1698 = vmatpush1.bf16.msra.mxu0 %v1206
    %1699 = vmatprep.mubr.bf16.mxu0 %v1621
    %1700 = vmatmul.mubr.bf16.gmra.mrb[0].mxu0 %v1620
    %v1701 = vpop.f32.mrb[0].mxu0
    %v1702 = vadd.f32 0.0, %v1701
    %v1703 = vpop.f32.mrb[0].mxu0
    %v1704 = vadd.f32 0.0, %v1703
    %v1705 = vpop.f32.mrb[0].mxu0
    %v1706 = vpop.f32.mrb[0].mxu0
    %1707 = vdwg.mxu0
    %v1708 = vadd.f32 %v1622, %v1661
    %v1709 = vadd.f32 %v1623, %v1663
    %v1710 = vadd.f32 %v1624, %v1702
    %v1711 = vadd.f32 %v1625, %v1704
    %v1712 = vxor.u32 %v1708, 2147483648
    %v1713 = vmul.f32 %v1712, 1.442695
    %v1714 = vpow.pop %v1713
    %v1715 = vadd.f32 %v1714, 1.0
    %v1716 = vrcp.pop %v1715
    %v1717 = vmul.f32 1.0, %v1716
    %v1718 = vxor.u32 %v1709, 2147483648
    %v1719 = vmul.f32 %v1718, 1.442695
    %v1720 = vpow.pop %v1719
    %v1721 = vadd.f32 %v1720, 1.0
    %v1722 = vrcp.pop %v1721
    %v1723 = vmul.f32 1.0, %v1722
    %v1724 = vtanh.pop %v1710
    %v1725 = vxor.u32 %v1711, 2147483648
    %v1726 = vmul.f32 %v1725, 1.442695
    %v1727 = vpow.pop %v1726
    %v1728 = vadd.f32 %v1727, 1.0
    %v1729 = vrcp.pop %v1728
    %v1730 = vmul.f32 1.0, %v1729
    %v1731 = vmul.f32 %v1723, %v1615
    %v1732 = vmul.f32 %v1717, %v1724
    %v1733 = vadd.f32 %v1731, %v1732
    %v1734 = vtanh.pop %v1733
    %v1735 = vmul.f32 %v1730, %v1734
    %v1736 = vmul.f32 %v1735, %v820
    %v1737 = vmul.f32 %v1735, %v825
    %v1738 = vpack.c.bf16 %v1736, %v1736
    %v1739 = vpack.c.bf16 %v1737, %v1737
    %v1740 = vadd.f32 %v683, %v880
    %v1741 = vadd.f32 %v685, %v881
    %v1742 = vadd.f32 %v796, %v882
    %v1743 = vadd.f32 %v798, %v883
    %1744 = vmatprep.subr.bf16.mxu0 %v1145
    %1745 = vmatpush1.bf16.msra.mxu0 %v1144
    %1746 = vmatprep.subr.bf16.mxu0 %v1149
    %1747 = vmatpush1.bf16.msra.mxu0 %v1148
    %1748 = vmatprep.subr.bf16.mxu0 %v1153
    %1749 = vmatpush1.bf16.msra.mxu0 %v1152
    %1750 = vmatprep.subr.bf16.mxu0 %v1157
    %1751 = vmatpush1.bf16.msra.mxu0 %v1156
    %1752 = vmatprep.subr.bf16.mxu0 %v1161
    %1753 = vmatpush1.bf16.msra.mxu0 %v1160
    %1754 = vmatprep.subr.bf16.mxu0 %v1165
    %1755 = vmatpush1.bf16.msra.mxu0 %v1164
    %1756 = vmatprep.subr.bf16.mxu0 %v1169
    %1757 = vmatpush1.bf16.msra.mxu0 %v1168
    %1758 = vmatprep.subr.bf16.mxu0 %v1173
    %1759 = vmatpush1.bf16.msra.mxu0 %v1172
    %1760 = vmatprep.subr.bf16.mxu0 %v1177
    %1761 = vmatpush1.bf16.msra.mxu0 %v1176
    %1762 = vmatprep.subr.bf16.mxu0 %v1181
    %1763 = vmatpush1.bf16.msra.mxu0 %v1180
    %1764 = vmatprep.subr.bf16.mxu0 %v1185
    %1765 = vmatpush1.bf16.msra.mxu0 %v1184
    %1766 = vmatprep.subr.bf16.mxu0 %v1189
    %1767 = vmatpush1.bf16.msra.mxu0 %v1188
    %1768 = vmatprep.subr.bf16.mxu0 %v1193
    %1769 = vmatpush1.bf16.msra.mxu0 %v1192
    %1770 = vmatprep.subr.bf16.mxu0 %v1197
    %1771 = vmatpush1.bf16.msra.mxu0 %v1196
    %1772 = vmatprep.subr.bf16.mxu0 %v1201
    %1773 = vmatpush1.bf16.msra.mxu0 %v1200
    %1774 = vmatprep.subr.bf16.mxu0 %v1205
    %1775 = vmatpush1.bf16.msra.mxu0 %v1204
    %1776 = vmatprep.mubr.bf16.mxu0 %v1739
    %1777 = vmatmul.mubr.bf16.gmra.mrb[0].mxu0 %v1738
    %v1778 = vpop.f32.mrb[0].mxu0
    %v1779 = vadd.f32 0.0, %v1778
    %v1780 = vpop.f32.mrb[0].mxu0
    %v1781 = vadd.f32 0.0, %v1780
    %v1782 = vpop.f32.mrb[0].mxu0
    %v1783 = vpop.f32.mrb[0].mxu0
    %1784 = vdwg.mxu0
    %1785 = vmatprep.subr.bf16.mxu0 %v1147
    %1786 = vmatpush1.bf16.msra.mxu0 %v1146
    %1787 = vmatprep.subr.bf16.mxu0 %v1151
    %1788 = vmatpush1.bf16.msra.mxu0 %v1150
    %1789 = vmatprep.subr.bf16.mxu0 %v1155
    %1790 = vmatpush1.bf16.msra.mxu0 %v1154
    %1791 = vmatprep.subr.bf16.mxu0 %v1159
    %1792 = vmatpush1.bf16.msra.mxu0 %v1158
    %1793 = vmatprep.subr.bf16.mxu0 %v1163
    %1794 = vmatpush1.bf16.msra.mxu0 %v1162
    %1795 = vmatprep.subr.bf16.mxu0 %v1167
    %1796 = vmatpush1.bf16.msra.mxu0 %v1166
    %1797 = vmatprep.subr.bf16.mxu0 %v1171
    %1798 = vmatpush1.bf16.msra.mxu0 %v1170
    %1799 = vmatprep.subr.bf16.mxu0 %v1175
    %1800 = vmatpush1.bf16.msra.mxu0 %v1174
    %1801 = vmatprep.subr.bf16.mxu0 %v1179
    %1802 = vmatpush1.bf16.msra.mxu0 %v1178
    %1803 = vmatprep.subr.bf16.mxu0 %v1183
    %1804 = vmatpush1.bf16.msra.mxu0 %v1182
    %1805 = vmatprep.subr.bf16.mxu0 %v1187
    %1806 = vmatpush1.bf16.msra.mxu0 %v1186
    %1807 = vmatprep.subr.bf16.mxu0 %v1191
    %1808 = vmatpush1.bf16.msra.mxu0 %v1190
    %1809 = vmatprep.subr.bf16.mxu0 %v1195
    %1810 = vmatpush1.bf16.msra.mxu0 %v1194
    %1811 = vmatprep.subr.bf16.mxu0 %v1199
    %1812 = vmatpush1.bf16.msra.mxu0 %v1198
    %1813 = vmatprep.subr.bf16.mxu0 %v1203
    %1814 = vmatpush1.bf16.msra.mxu0 %v1202
    %1815 = vmatprep.subr.bf16.mxu0 %v1207
    %1816 = vmatpush1.bf16.msra.mxu0 %v1206
    %1817 = vmatprep.mubr.bf16.mxu0 %v1739
    %1818 = vmatmul.mubr.bf16.gmra.mrb[0].mxu0 %v1738
    %v1819 = vpop.f32.mrb[0].mxu0
    %v1820 = vadd.f32 0.0, %v1819
    %v1821 = vpop.f32.mrb[0].mxu0
    %v1822 = vadd.f32 0.0, %v1821
    %v1823 = vpop.f32.mrb[0].mxu0
    %v1824 = vpop.f32.mrb[0].mxu0
    %1825 = vdwg.mxu0
    %v1826 = vadd.f32 %v1740, %v1779
    %v1827 = vadd.f32 %v1741, %v1781
    %v1828 = vadd.f32 %v1742, %v1820
    %v1829 = vadd.f32 %v1743, %v1822
    %v1830 = vxor.u32 %v1826, 2147483648
    %v1831 = vmul.f32 %v1830, 1.442695
    %v1832 = vpow.pop %v1831
    %v1833 = vadd.f32 %v1832, 1.0
    %v1834 = vrcp.pop %v1833
    %v1835 = vmul.f32 1.0, %v1834
    %v1836 = vxor.u32 %v1827, 2147483648
    %v1837 = vmul.f32 %v1836, 1.442695
    %v1838 = vpow.pop %v1837
    %v1839 = vadd.f32 %v1838, 1.0
    %v1840 = vrcp.pop %v1839
    %v1841 = vmul.f32 1.0, %v1840
    %v1842 = vtanh.pop %v1828
    %v1843 = vxor.u32 %v1829, 2147483648
    %v1844 = vmul.f32 %v1843, 1.442695
    %v1845 = vpow.pop %v1844
    %v1846 = vadd.f32 %v1845, 1.0
    %v1847 = vrcp.pop %v1846
    %v1848 = vmul.f32 1.0, %v1847
    %v1849 = vmul.f32 %v1841, %v1733
    %v1850 = vmul.f32 %v1835, %v1842
    %v1851 = vadd.f32 %v1849, %v1850
    %v1852 = vtanh.pop %v1851
    %v1853 = vmul.f32 %v1848, %v1852
    %v1854 = vmul.f32 %v1853, %v820
    %v1855 = vmul.f32 %v1853, %v825
    %v1856 = vpack.c.bf16 %v1854, %v1854
    %v1857 = vpack.c.bf16 %v1855, %v1855
    %v1858 = vadd.f32 %v689, %v880
    %v1859 = vadd.f32 %v691, %v881
    %v1860 = vadd.f32 %v802, %v882
    %v1861 = vadd.f32 %v804, %v883
    %1862 = vmatprep.subr.bf16.mxu0 %v1145
    %1863 = vmatpush1.bf16.msra.mxu0 %v1144
    %1864 = vmatprep.subr.bf16.mxu0 %v1149
    %1865 = vmatpush1.bf16.msra.mxu0 %v1148
    %1866 = vmatprep.subr.bf16.mxu0 %v1153
    %1867 = vmatpush1.bf16.msra.mxu0 %v1152
    %1868 = vmatprep.subr.bf16.mxu0 %v1157
    %1869 = vmatpush1.bf16.msra.mxu0 %v1156
    %1870 = vmatprep.subr.bf16.mxu0 %v1161
    %1871 = vmatpush1.bf16.msra.mxu0 %v1160
    %1872 = vmatprep.subr.bf16.mxu0 %v1165
    %1873 = vmatpush1.bf16.msra.mxu0 %v1164
    %1874 = vmatprep.subr.bf16.mxu0 %v1169
    %1875 = vmatpush1.bf16.msra.mxu0 %v1168
    %1876 = vmatprep.subr.bf16.mxu0 %v1173
    %1877 = vmatpush1.bf16.msra.mxu0 %v1172
    %1878 = vmatprep.subr.bf16.mxu0 %v1177
    %1879 = vmatpush1.bf16.msra.mxu0 %v1176
    %1880 = vmatprep.subr.bf16.mxu0 %v1181
    %1881 = vmatpush1.bf16.msra.mxu0 %v1180
    %1882 = vmatprep.subr.bf16.mxu0 %v1185
    %1883 = vmatpush1.bf16.msra.mxu0 %v1184
    %1884 = vmatprep.subr.bf16.mxu0 %v1189
    %1885 = vmatpush1.bf16.msra.mxu0 %v1188
    %1886 = vmatprep.subr.bf16.mxu0 %v1193
    %1887 = vmatpush1.bf16.msra.mxu0 %v1192
    %1888 = vmatprep.subr.bf16.mxu0 %v1197
    %1889 = vmatpush1.bf16.msra.mxu0 %v1196
    %1890 = vmatprep.subr.bf16.mxu0 %v1201
    %1891 = vmatpush1.bf16.msra.mxu0 %v1200
    %1892 = vmatprep.subr.bf16.mxu0 %v1205
    %1893 = vmatpush1.bf16.msra.mxu0 %v1204
    %1894 = vmatprep.mubr.bf16.mxu0 %v1857
    %1895 = vmatmul.mubr.bf16.gmra.mrb[0].mxu0 %v1856
    %v1896 = vpop.f32.mrb[0].mxu0
    %v1897 = vadd.f32 0.0, %v1896
    %v1898 = vpop.f32.mrb[0].mxu0
    %v1899 = vadd.f32 0.0, %v1898
    %v1900 = vpop.f32.mrb[0].mxu0
    %v1901 = vpop.f32.mrb[0].mxu0
    %1902 = vdwg.mxu0
    %1903 = vmatprep.subr.bf16.mxu0 %v1147
    %1904 = vmatpush1.bf16.msra.mxu0 %v1146
    %1905 = vmatprep.subr.bf16.mxu0 %v1151
    %1906 = vmatpush1.bf16.msra.mxu0 %v1150
    %1907 = vmatprep.subr.bf16.mxu0 %v1155
    %1908 = vmatpush1.bf16.msra.mxu0 %v1154
    %1909 = vmatprep.subr.bf16.mxu0 %v1159
    %1910 = vmatpush1.bf16.msra.mxu0 %v1158
    %1911 = vmatprep.subr.bf16.mxu0 %v1163
    %1912 = vmatpush1.bf16.msra.mxu0 %v1162
    %1913 = vmatprep.subr.bf16.mxu0 %v1167
    %1914 = vmatpush1.bf16.msra.mxu0 %v1166
    %1915 = vmatprep.subr.bf16.mxu0 %v1171
    %1916 = vmatpush1.bf16.msra.mxu0 %v1170
    %1917 = vmatprep.subr.bf16.mxu0 %v1175
    %1918 = vmatpush1.bf16.msra.mxu0 %v1174
    %1919 = vmatprep.subr.bf16.mxu0 %v1179
    %1920 = vmatpush1.bf16.msra.mxu0 %v1178
    %1921 = vmatprep.subr.bf16.mxu0 %v1183
    %1922 = vmatpush1.bf16.msra.mxu0 %v1182
    %1923 = vmatprep.subr.bf16.mxu0 %v1187
    %1924 = vmatpush1.bf16.msra.mxu0 %v1186
    %1925 = vmatprep.subr.bf16.mxu0 %v1191
    %1926 = vmatpush1.bf16.msra.mxu0 %v1190
    %1927 = vmatprep.subr.bf16.mxu0 %v1195
    %1928 = vmatpush1.bf16.msra.mxu0 %v1194
    %1929 = vmatprep.subr.bf16.mxu0 %v1199
    %1930 = vmatpush1.bf16.msra.mxu0 %v1198
    %1931 = vmatprep.subr.bf16.mxu0 %v1203
    %1932 = vmatpush1.bf16.msra.mxu0 %v1202
    %1933 = vmatprep.subr.bf16.mxu0 %v1207
    %1934 = vmatpush1.bf16.msra.mxu0 %v1206
    %1935 = vmatprep.mubr.bf16.mxu0 %v1857
    %1936 = vmatmul.mubr.bf16.gmra.mrb[0].mxu0 %v1856
    %v1937 = vpop.f32.mrb[0].mxu0
    %v1938 = vadd.f32 0.0, %v1937
    %v1939 = vpop.f32.mrb[0].mxu0
    %v1940 = vadd.f32 0.0, %v1939
    %v1941 = vpop.f32.mrb[0].mxu0
    %v1942 = vpop.f32.mrb[0].mxu0
    %1943 = vdwg.mxu0
    %v1944 = vadd.f32 %v1858, %v1897
    %v1945 = vadd.f32 %v1859, %v1899
    %v1946 = vadd.f32 %v1860, %v1938
    %v1947 = vadd.f32 %v1861, %v1940
    %v1948 = vxor.u32 %v1944, 2147483648
    %v1949 = vmul.f32 %v1948, 1.442695
    %v1950 = vpow.pop %v1949
    %v1951 = vadd.f32 %v1950, 1.0
    %v1952 = vrcp.pop %v1951
    %v1953 = vmul.f32 1.0, %v1952
    %v1954 = vxor.u32 %v1945, 2147483648
    %v1955 = vmul.f32 %v1954, 1.442695
    %v1956 = vpow.pop %v1955
    %v1957 = vadd.f32 %v1956, 1.0
    %v1958 = vrcp.pop %v1957
    %v1959 = vmul.f32 1.0, %v1958
    %v1960 = vtanh.pop %v1946
    %v1961 = vxor.u32 %v1947, 2147483648
    %v1962 = vmul.f32 %v1961, 1.442695
    %v1963 = vpow.pop %v1962
    %v1964 = vadd.f32 %v1963, 1.0
    %v1965 = vrcp.pop %v1964
    %v1966 = vmul.f32 1.0, %v1965
    %v1967 = vmul.f32 %v1959, %v1851
    %v1968 = vmul.f32 %v1953, %v1960
    %v1969 = vadd.f32 %v1967, %v1968
    %v1970 = vtanh.pop %v1969
    %v1971 = vmul.f32 %v1966, %v1970
    %v1972 = vmul.f32 %v1971, %v820
    %v1973 = vmul.f32 %v1971, %v825
    %v1974 = vpack.c.bf16 %v1972, %v1972
    %v1975 = vpack.c.bf16 %v1973, %v1973
    %v1976 = vadd.f32 %v695, %v880
    %v1977 = vadd.f32 %v697, %v881
    %v1978 = vadd.f32 %v808, %v882
    %v1979 = vadd.f32 %v810, %v883
    %1980 = vmatprep.subr.bf16.mxu0 %v1145
    %1981 = vmatpush1.bf16.msra.mxu0 %v1144
    %1982 = vmatprep.subr.bf16.mxu0 %v1149
    %1983 = vmatpush1.bf16.msra.mxu0 %v1148
    %1984 = vmatprep.subr.bf16.mxu0 %v1153
    %1985 = vmatpush1.bf16.msra.mxu0 %v1152
    %1986 = vmatprep.subr.bf16.mxu0 %v1157
    %1987 = vmatpush1.bf16.msra.mxu0 %v1156
    %1988 = vmatprep.subr.bf16.mxu0 %v1161
    %1989 = vmatpush1.bf16.msra.mxu0 %v1160
    %1990 = vmatprep.subr.bf16.mxu0 %v1165
    %1991 = vmatpush1.bf16.msra.mxu0 %v1164
    %1992 = vmatprep.subr.bf16.mxu0 %v1169
    %1993 = vmatpush1.bf16.msra.mxu0 %v1168
    %1994 = vmatprep.subr.bf16.mxu0 %v1173
    %1995 = vmatpush1.bf16.msra.mxu0 %v1172
    %1996 = vmatprep.subr.bf16.mxu0 %v1177
    %1997 = vmatpush1.bf16.msra.mxu0 %v1176
    %1998 = vmatprep.subr.bf16.mxu0 %v1181
    %1999 = vmatpush1.bf16.msra.mxu0 %v1180
    %2000 = vmatprep.subr.bf16.mxu0 %v1185
    %2001 = vmatpush1.bf16.msra.mxu0 %v1184
    %2002 = vmatprep.subr.bf16.mxu0 %v1189
    %2003 = vmatpush1.bf16.msra.mxu0 %v1188
    %2004 = vmatprep.subr.bf16.mxu0 %v1193
    %2005 = vmatpush1.bf16.msra.mxu0 %v1192
    %2006 = vmatprep.subr.bf16.mxu0 %v1197
    %2007 = vmatpush1.bf16.msra.mxu0 %v1196
    %2008 = vmatprep.subr.bf16.mxu0 %v1201
    %2009 = vmatpush1.bf16.msra.mxu0 %v1200
    %2010 = vmatprep.subr.bf16.mxu0 %v1205
    %2011 = vmatpush1.bf16.msra.mxu0 %v1204
    %2012 = vmatprep.mubr.bf16.mxu0 %v1975
    %2013 = vmatmul.mubr.bf16.gmra.mrb[0].mxu0 %v1974
    %v2014 = vpop.f32.mrb[0].mxu0
    %v2015 = vadd.f32 0.0, %v2014
    %v2016 = vpop.f32.mrb[0].mxu0
    %v2017 = vadd.f32 0.0, %v2016
    %v2018 = vpop.f32.mrb[0].mxu0
    %v2019 = vpop.f32.mrb[0].mxu0
    %2020 = vdwg.mxu0
    %2021 = vmatprep.subr.bf16.mxu0 %v1147
    %2022 = vmatpush1.bf16.msra.mxu0 %v1146
    %2023 = vmatprep.subr.bf16.mxu0 %v1151
    %2024 = vmatpush1.bf16.msra.mxu0 %v1150
    %2025 = vmatprep.subr.bf16.mxu0 %v1155
    %2026 = vmatpush1.bf16.msra.mxu0 %v1154
    %2027 = vmatprep.subr.bf16.mxu0 %v1159
    %2028 = vmatpush1.bf16.msra.mxu0 %v1158
    %2029 = vmatprep.subr.bf16.mxu0 %v1163
    %2030 = vmatpush1.bf16.msra.mxu0 %v1162
    %2031 = vmatprep.subr.bf16.mxu0 %v1167
    %2032 = vmatpush1.bf16.msra.mxu0 %v1166
    %2033 = vmatprep.subr.bf16.mxu0 %v1171
    %2034 = vmatpush1.bf16.msra.mxu0 %v1170
    %2035 = vmatprep.subr.bf16.mxu0 %v1175
    %2036 = vmatpush1.bf16.msra.mxu0 %v1174
    %2037 = vmatprep.subr.bf16.mxu0 %v1179
    %2038 = vmatpush1.bf16.msra.mxu0 %v1178
    %2039 = vmatprep.subr.bf16.mxu0 %v1183
    %2040 = vmatpush1.bf16.msra.mxu0 %v1182
    %2041 = vmatprep.subr.bf16.mxu0 %v1187
    %2042 = vmatpush1.bf16.msra.mxu0 %v1186
    %2043 = vmatprep.subr.bf16.mxu0 %v1191
    %2044 = vmatpush1.bf16.msra.mxu0 %v1190
    %2045 = vmatprep.subr.bf16.mxu0 %v1195
    %2046 = vmatpush1.bf16.msra.mxu0 %v1194
    %2047 = vmatprep.subr.bf16.mxu0 %v1199
    %2048 = vmatpush1.bf16.msra.mxu0 %v1198
    %2049 = vmatprep.subr.bf16.mxu0 %v1203
    %2050 = vmatpush1.bf16.msra.mxu0 %v1202
    %2051 = vmatprep.subr.bf16.mxu0 %v1207
    %2052 = vmatpush1.bf16.msra.mxu0 %v1206
    %2053 = vmatprep.mubr.bf16.mxu0 %v1975
    %2054 = vmatmul.mubr.bf16.gmra.mrb[0].mxu0 %v1974
    %v2055 = vpop.f32.mrb[0].mxu0
    %v2056 = vadd.f32 0.0, %v2055
    %v2057 = vpop.f32.mrb[0].mxu0
    %v2058 = vadd.f32 0.0, %v2057
    %v2059 = vpop.f32.mrb[0].mxu0
    %v2060 = vpop.f32.mrb[0].mxu0
    %2061 = vdwg.mxu0
    %v2062 = vadd.f32 %v1976, %v2015
    %v2063 = vadd.f32 %v1977, %v2017
    %v2064 = vadd.f32 %v1978, %v2056
    %v2065 = vadd.f32 %v1979, %v2058
    %v2066 = vxor.u32 %v2062, 2147483648
    %v2067 = vmul.f32 %v2066, 1.442695
    %v2068 = vpow.pop %v2067
    %v2069 = vadd.f32 %v2068, 1.0
    %v2070 = vrcp.pop %v2069
    %v2071 = vmul.f32 1.0, %v2070
    %v2072 = vxor.u32 %v2063, 2147483648
    %v2073 = vmul.f32 %v2072, 1.442695
    %v2074 = vpow.pop %v2073
    %v2075 = vadd.f32 %v2074, 1.0
    %v2076 = vrcp.pop %v2075
    %v2077 = vmul.f32 1.0, %v2076
    %v2078 = vtanh.pop %v2064
    %v2079 = vxor.u32 %v2065, 2147483648
    %v2080 = vmul.f32 %v2079, 1.442695
    %v2081 = vpow.pop %v2080
    %v2082 = vadd.f32 %v2081, 1.0
    %v2083 = vrcp.pop %v2082
    %v2084 = vmul.f32 1.0, %v2083
    %v2085 = vmul.f32 %v2077, %v1969
    %v2086 = vmul.f32 %v2071, %v2078
    %v2087 = vadd.f32 %v2085, %v2086
    %v2088 = vtanh.pop %v2087
    %v2089 = vmul.f32 %v2084, %v2088
    %v2090 = vmul.f32 %v2089, %v820
    %v2091 = vmul.f32 %v2089, %v825
    %v2092 = vpack.c.bf16 %v2090, %v2090
    %v2093 = vpack.c.bf16 %v2091, %v2091
    %v2094 = vadd.f32 %v701, %v880
    %v2095 = vadd.f32 %v703, %v881
    %v2096 = vadd.f32 %v814, %v882
    %v2097 = vadd.f32 %v816, %v883
    %2098 = vmatprep.subr.bf16.mxu0 %v1145
    %2099 = vmatpush1.bf16.msra.mxu0 %v1144
    %2100 = vmatprep.subr.bf16.mxu0 %v1149
    %2101 = vmatpush1.bf16.msra.mxu0 %v1148
    %2102 = vmatprep.subr.bf16.mxu0 %v1153
    %2103 = vmatpush1.bf16.msra.mxu0 %v1152
    %2104 = vmatprep.subr.bf16.mxu0 %v1157
    %2105 = vmatpush1.bf16.msra.mxu0 %v1156
    %2106 = vmatprep.subr.bf16.mxu0 %v1161
    %2107 = vmatpush1.bf16.msra.mxu0 %v1160
    %2108 = vmatprep.subr.bf16.mxu0 %v1165
    %2109 = vmatpush1.bf16.msra.mxu0 %v1164
    %2110 = vmatprep.subr.bf16.mxu0 %v1169
    %2111 = vmatpush1.bf16.msra.mxu0 %v1168
    %2112 = vmatprep.subr.bf16.mxu0 %v1173
    %2113 = vmatpush1.bf16.msra.mxu0 %v1172
    %2114 = vmatprep.subr.bf16.mxu0 %v1177
    %2115 = vmatpush1.bf16.msra.mxu0 %v1176
    %2116 = vmatprep.subr.bf16.mxu0 %v1181
    %2117 = vmatpush1.bf16.msra.mxu0 %v1180
    %2118 = vmatprep.subr.bf16.mxu0 %v1185
    %2119 = vmatpush1.bf16.msra.mxu0 %v1184
    %2120 = vmatprep.subr.bf16.mxu0 %v1189
    %2121 = vmatpush1.bf16.msra.mxu0 %v1188
    %2122 = vmatprep.subr.bf16.mxu0 %v1193
    %2123 = vmatpush1.bf16.msra.mxu0 %v1192
    %2124 = vmatprep.subr.bf16.mxu0 %v1197
    %2125 = vmatpush1.bf16.msra.mxu0 %v1196
    %2126 = vmatprep.subr.bf16.mxu0 %v1201
    %2127 = vmatpush1.bf16.msra.mxu0 %v1200
    %2128 = vmatprep.subr.bf16.mxu0 %v1205
    %2129 = vmatpush1.bf16.msra.mxu0 %v1204
    %2130 = vmatprep.mubr.bf16.mxu0 %v2093
    %2131 = vmatmul.mubr.bf16.gmra.mrb[0].mxu0 %v2092
    %v2132 = vpop.f32.mrb[0].mxu0
    %v2133 = vadd.f32 0.0, %v2132
    %v2134 = vpop.f32.mrb[0].mxu0
    %v2135 = vadd.f32 0.0, %v2134
    %v2136 = vpop.f32.mrb[0].mxu0
    %v2137 = vpop.f32.mrb[0].mxu0
    %2138 = vdwg.mxu0
    %2139 = vmatprep.subr.bf16.mxu0 %v1147
    %2140 = vmatpush1.bf16.msra.mxu0 %v1146
    %2141 = vmatprep.subr.bf16.mxu0 %v1151
    %2142 = vmatpush1.bf16.msra.mxu0 %v1150
    %2143 = vmatprep.subr.bf16.mxu0 %v1155
    %2144 = vmatpush1.bf16.msra.mxu0 %v1154
    %2145 = vmatprep.subr.bf16.mxu0 %v1159
    %2146 = vmatpush1.bf16.msra.mxu0 %v1158
    %2147 = vmatprep.subr.bf16.mxu0 %v1163
    %2148 = vmatpush1.bf16.msra.mxu0 %v1162
    %2149 = vmatprep.subr.bf16.mxu0 %v1167
    %2150 = vmatpush1.bf16.msra.mxu0 %v1166
    %2151 = vmatprep.subr.bf16.mxu0 %v1171
    %2152 = vmatpush1.bf16.msra.mxu0 %v1170
    %2153 = vmatprep.subr.bf16.mxu0 %v1175
    %2154 = vmatpush1.bf16.msra.mxu0 %v1174
    %2155 = vmatprep.subr.bf16.mxu0 %v1179
    %2156 = vmatpush1.bf16.msra.mxu0 %v1178
    %2157 = vmatprep.subr.bf16.mxu0 %v1183
    %2158 = vmatpush1.bf16.msra.mxu0 %v1182
    %2159 = vmatprep.subr.bf16.mxu0 %v1187
    %2160 = vmatpush1.bf16.msra.mxu0 %v1186
    %2161 = vmatprep.subr.bf16.mxu0 %v1191
    %2162 = vmatpush1.bf16.msra.mxu0 %v1190
    %2163 = vmatprep.subr.bf16.mxu0 %v1195
    %2164 = vmatpush1.bf16.msra.mxu0 %v1194
    %2165 = vmatprep.subr.bf16.mxu0 %v1199
    %2166 = vmatpush1.bf16.msra.mxu0 %v1198
    %2167 = vmatprep.subr.bf16.mxu0 %v1203
    %2168 = vmatpush1.bf16.msra.mxu0 %v1202
    %2169 = vmatprep.subr.bf16.mxu0 %v1207
    %2170 = vmatpush1.bf16.msra.mxu0 %v1206
    %2171 = vmatprep.mubr.bf16.mxu0 %v2093
    %2172 = vmatmul.mubr.bf16.gmra.mrb[0].mxu0 %v2092
    %v2173 = vpop.f32.mrb[0].mxu0
    %v2174 = vadd.f32 0.0, %v2173
    %v2175 = vpop.f32.mrb[0].mxu0
    %v2176 = vadd.f32 0.0, %v2175
    %v2177 = vpop.f32.mrb[0].mxu0
    %v2178 = vpop.f32.mrb[0].mxu0
    %2179 = vdwg.mxu0
    %v2180 = vadd.f32 %v2094, %v2133
    %v2181 = vadd.f32 %v2095, %v2135
    %v2182 = vadd.f32 %v2096, %v2174
    %v2183 = vadd.f32 %v2097, %v2176
    %v2184 = vxor.u32 %v2180, 2147483648
    %v2185 = vmul.f32 %v2184, 1.442695
    %v2186 = vpow.pop %v2185
    %v2187 = vadd.f32 %v2186, 1.0
    %v2188 = vrcp.pop %v2187
    %v2189 = vmul.f32 1.0, %v2188
    %v2190 = vxor.u32 %v2181, 2147483648
    %v2191 = vmul.f32 %v2190, 1.442695
    %v2192 = vpow.pop %v2191
    %v2193 = vadd.f32 %v2192, 1.0
    %v2194 = vrcp.pop %v2193
    %v2195 = vmul.f32 1.0, %v2194
    %v2196 = vtanh.pop %v2182
    %v2197 = vxor.u32 %v2183, 2147483648
    %v2198 = vmul.f32 %v2197, 1.442695
    %v2199 = vpow.pop %v2198
    %v2200 = vadd.f32 %v2199, 1.0
    %v2201 = vrcp.pop %v2200
    %v2202 = vmul.f32 1.0, %v2201
    %v2203 = vmul.f32 %v2195, %v2087
    %v2204 = vmul.f32 %v2189, %v2196
    %v2205 = vadd.f32 %v2203, %v2204
    %v2206 = vtanh.pop %v2205
    %v2207 = vmul.f32 %v2202, %v2206
    %v2209 = vrot.slane %v2207, 2
    %v2212 = vrot.slane %v2089, 2
    %v2214 = vrot.slane %v1971, 2
    %v2216 = vrot.slane %v1853, 2
    %v2218 = vrot.slane %v1735, 2
    %v2221 = vrot.slane %v1617, 2
    %v2223 = vrot.slane %v1499, 2
    %v2225 = vrot.slane %v1381, 2
    %v2226 = vrot.slane %v1499, 6
    %v2227 = vrot.slane %v2212, 6
    %v2230 = vrot.slane %v1617, 4
    %v2231 = vrot.slane %v2214, 4
    %v2234 = vrot.slane %v2216, 2
    %v2236 = vrot.slane %v1971, 6
    %v2237 = vrot.slane %v2221, 6
    %v2240 = vrot.slane %v2089, 4
    %v2241 = vrot.slane %v2223, 4
    %v2244 = vrot.slane %v2225, 2
    %v2246 = vsel %vm223, %v1381, %v2226
    %v2247 = vsel %vm223, %v2209, %v2227
    %vm2248 = vcmask 1043456
    %v2249 = vsel %vm2248, %v2246, %v2230
    %v2250 = vsel %vm2248, %v2247, %v2231
    %vm2251 = vcmask 1045504
    %v2252 = vsel %vm2251, %v2249, %v2218
    %v2253 = vsel %vm2251, %v2250, %v2234
    %v2254 = vsel %vm223, %v1853, %v2236
    %v2255 = vsel %vm223, %v2218, %v2237
    %v2256 = vsel %vm2248, %v2254, %v2240
    %v2257 = vsel %vm2248, %v2255, %v2241
    %v2258 = vsel %vm2251, %v2256, %v2209
    %v2259 = vsel %vm2251, %v2257, %v2244
    %v2260 = vld [vmem:[%s5] sm:$0xff]
    %v2261 = vld [vmem:[%s5 + $0x8] sm:$0xff]
    %v2262 = vld [vmem:[%s5 + $0x10] sm:$0xff]
    %v2263 = vld [vmem:[%s5 + $0x18] sm:$0xff]
    %v2264 = vld [vmem:[%s5 + $0x20] sm:$0xff]
    %v2265 = vld [vmem:[%s5 + $0x28] sm:$0xff]
    %v2266 = vld [vmem:[%s5 + $0x30] sm:$0xff]
    %v2267 = vld [vmem:[%s5 + $0x38] sm:$0xff]
    %v2268 = vld [vmem:[%s5 + $0x40] sm:$0xff]
    %v2269 = vld [vmem:[%s5 + $0x48] sm:$0xff]
    %v2270 = vld [vmem:[%s5 + $0x50] sm:$0xff]
    %v2271 = vld [vmem:[%s5 + $0x58] sm:$0xff]
    %v2272 = vld [vmem:[%s5 + $0x60] sm:$0xff]
    %v2273 = vld [vmem:[%s5 + $0x68] sm:$0xff]
    %v2274 = vld [vmem:[%s5 + $0x70] sm:$0xff]
    %v2275 = vld [vmem:[%s5 + $0x78] sm:$0xff]
    %v2276 = vld [vmem:[%s5 + $0x80] sm:$0xff]
    %v2277 = vld [vmem:[%s5 + $0x88] sm:$0xff]
    %v2278 = vld [vmem:[%s5 + $0x90] sm:$0xff]
    %v2279 = vld [vmem:[%s5 + $0x98] sm:$0xff]
    %v2280 = vld [vmem:[%s5 + $0xa0] sm:$0xff]
    %v2281 = vld [vmem:[%s5 + $0xa8] sm:$0xff]
    %v2282 = vld [vmem:[%s5 + $0xb0] sm:$0xff]
    %v2283 = vld [vmem:[%s5 + $0xb8] sm:$0xff]
    %v2284 = vld [vmem:[%s5 + $0xc0] sm:$0xff]
    %v2285 = vld [vmem:[%s5 + $0xc8] sm:$0xff]
    %v2286 = vld [vmem:[%s5 + $0xd0] sm:$0xff]
    %v2287 = vld [vmem:[%s5 + $0xd8] sm:$0xff]
    %v2288 = vld [vmem:[%s5 + $0xe0] sm:$0xff]
    %v2289 = vld [vmem:[%s5 + $0xe8] sm:$0xff]
    %v2290 = vld [vmem:[%s5 + $0xf0] sm:$0xff]
    %v2291 = vld [vmem:[%s5 + $0xf8] sm:$0xff]
    %v2292 = vld [vmem:[%s5 + $0x100] sm:$0x1]
    %v2293 = vlaneseq
    %v2294 = vshrl.u32 %v2293, 7
    %v2295 = vsub.s32 0, %v2294
    %v2296 = vrot.slane %v2292, %v2295
    %2297 = vmatprep.subr.mxu0 0.0
    %2298 = vmatpush1.msra.mxu0 %v2260
    %2299 = vmatprep.subr.mxu0 0.0
    %2300 = vmatpush1.msra.mxu0 %v2261
    %2301 = vmatprep.subr.mxu0 0.0
    %2302 = vmatpush1.msra.mxu0 %v2262
    %2303 = vmatprep.subr.mxu0 0.0
    %2304 = vmatpush1.msra.mxu0 %v2263
    %2305 = vmatprep.subr.mxu0 0.0
    %2306 = vmatpush1.msra.mxu0 %v2264
    %2307 = vmatprep.subr.mxu0 0.0
    %2308 = vmatpush1.msra.mxu0 %v2265
    %2309 = vmatprep.subr.mxu0 0.0
    %2310 = vmatpush1.msra.mxu0 %v2266
    %2311 = vmatprep.subr.mxu0 0.0
    %2312 = vmatpush1.msra.mxu0 %v2267
    %2313 = vmatprep.subr.mxu0 0.0
    %2314 = vmatpush1.msra.mxu0 %v2268
    %2315 = vmatprep.subr.mxu0 0.0
    %2316 = vmatpush1.msra.mxu0 %v2269
    %2317 = vmatprep.subr.mxu0 0.0
    %2318 = vmatpush1.msra.mxu0 %v2270
    %2319 = vmatprep.subr.mxu0 0.0
    %2320 = vmatpush1.msra.mxu0 %v2271
    %2321 = vmatprep.subr.mxu0 0.0
    %2322 = vmatpush1.msra.mxu0 %v2272
    %2323 = vmatprep.subr.mxu0 0.0
    %2324 = vmatpush1.msra.mxu0 %v2273
    %2325 = vmatprep.subr.mxu0 0.0
    %2326 = vmatpush1.msra.mxu0 %v2274
    %2327 = vmatprep.subr.mxu0 0.0
    %2328 = vmatpush1.msra.mxu0 %v2275
    %2329 = vmatprep.subr.mxu0 0.0
    %2330 = vmatpush1.msra.mxu0 %v2276
    %2331 = vmatprep.subr.mxu0 0.0
    %2332 = vmatpush1.msra.mxu0 %v2277
    %2333 = vmatprep.subr.mxu0 0.0
    %2334 = vmatpush1.msra.mxu0 %v2278
    %2335 = vmatprep.subr.mxu0 0.0
    %2336 = vmatpush1.msra.mxu0 %v2279
    %2337 = vmatprep.subr.mxu0 0.0
    %2338 = vmatpush1.msra.mxu0 %v2280
    %2339 = vmatprep.subr.mxu0 0.0
    %2340 = vmatpush1.msra.mxu0 %v2281
    %2341 = vmatprep.subr.mxu0 0.0
    %2342 = vmatpush1.msra.mxu0 %v2282
    %2343 = vmatprep.subr.mxu0 0.0
    %2344 = vmatpush1.msra.mxu0 %v2283
    %2345 = vmatprep.subr.mxu0 0.0
    %2346 = vmatpush1.msra.mxu0 %v2284
    %2347 = vmatprep.subr.mxu0 0.0
    %2348 = vmatpush1.msra.mxu0 %v2285
    %2349 = vmatprep.subr.mxu0 0.0
    %2350 = vmatpush1.msra.mxu0 %v2286
    %2351 = vmatprep.subr.mxu0 0.0
    %2352 = vmatpush1.msra.mxu0 %v2287
    %2353 = vmatprep.subr.mxu0 0.0
    %2354 = vmatpush1.msra.mxu0 %v2288
    %2355 = vmatprep.subr.mxu0 0.0
    %2356 = vmatpush1.msra.mxu0 %v2289
    %2357 = vmatprep.subr.mxu0 0.0
    %2358 = vmatpush1.msra.mxu0 %v2290
    %2359 = vmatprep.subr.mxu0 0.0
    %2360 = vmatpush1.msra.mxu0 %v2291
    %2361 = vmatprep.mubr.f32.mxu0 %v2253
    %2362 = vmatmul.mubr.f32.gmra.mrb[0].mxu0 %v2252
    %v2363 = vpop.f32.mrb[0].mxu0
    %v2364 = vadd.f32 %v2296, %v2363
    %v2365 = vpop.f32.mrb[0].mxu0
    %2366 = vmatprep.mubr.f32.mxu0 %v2259
    %2367 = vmatmul.mubr.f32.gmra.mrb[0].mxu0 %v2258
    %v2368 = vpop.f32.mrb[0].mxu0
    %v2369 = vadd.f32 %v2296, %v2368
    %v2370 = vpop.f32.mrb[0].mxu0
    %2371 = vdwg.mxu0
    %v2372 = vxor.u32 %v2364, 2147483648
    %v2373 = vxor.u32 %v2369, 2147483648
    %v2374 = vmul.f32 %v2372, 1.442695
    %v2375 = vpow.pop %v2374
    %v2376 = vmul.f32 %v2373, 1.442695
    %v2377 = vpow.pop %v2376
    %v2378 = vadd.f32 %v2375, 1.0
    %v2379 = vadd.f32 %v2377, 1.0
    %v2380 = vrcp.pop %v2378
    %v2381 = vmul.f32 1.0, %v2380
    %v2382 = vrcp.pop %v2379
    %v2383 = vmul.f32 1.0, %v2382
    %2384 = vst [vmem:[%s6] sm:$0xff] %v2381
    %2385 = vst [vmem:[%s6 + $0x8] sm:$0xff] %v2383
    // Predicated region
    $region34: #{named_entity_forward.1} parent=1 // pred_check
      _
    $region35: #{named_entity_forward.1} parent=1 // pred_check_branch
      %2387 = sbr.rel (0) target = $region37
    $region36: #{named_entity_forward.1} parent=1 // pred_region
      _
    $region37: #{named_entity_forward.1} parent=1 // pred_fallthru
      _
    // Predicated region
    $region38: #{named_entity_forward.1} parent=1 // pred_check
      _
    $region39: #{named_entity_forward.1} parent=1 // pred_check_branch
      %2389 = sbr.rel (0) target = $region41
    $region40: #{named_entity_forward.1} parent=1 // pred_region
      _
    $region41: #{named_entity_forward.1} parent=1 // pred_fallthru
      _
    %2390 = vsyncpa [#allocation3], 1
    %2391 = vsyncpa [#allocation5], 1

</llo_original>
